<compile_context>
chip_gen: v5e
topology: v5e:2x2
jax: 0.10.0
libtpu: 0.0.40
codegen_flags: <defaults>
</compile_context>

<pallas_src>
import functools

import jax
import jax.numpy as jnp
from jax import lax
from jax.experimental import pallas as pl
from jax.experimental.pallas import tpu as pltpu


def _round_up(x, m):
    return (x + m - 1) // m * m


def _pick_tile(m, cap, align=8):
    """Row-tile for a dim of extent m: full dim (always legal) or an exact
    divisor so no padding copy of the operand is needed."""
    if m <= cap:
        return m, m
    hi = max(align, cap - cap % align)
    for t in range(hi, align - 1, -align):
        if m % t == 0:
            return t, m
    return hi, _round_up(m, hi)          # rare fallback: pad rows


def _pick_k_tile(k, cap=2048):
    if k <= cap:
        return k
    if k % 128 == 0:
        for t in range(cap - cap % 128, 127, -128):
            if k % t == 0:
                return t
    return k                              # full-K fallback (still legal)


# --------------------------------------------------------------------------
# Fused Pallas matmul: optional (scale,bias,ReLU) prologue on A, bf16 MXU
# inputs, f32 accumulation, per-column batch sum / sum-of-squares epilogue.
# --------------------------------------------------------------------------
def _mm_kernel(x_ref, w_ref, *rest, has_affine):
    if has_affine:
        s_ref, b_ref, o_ref, sum_ref, ssq_ref, acc_ref = rest
    else:
        o_ref, sum_ref, ssq_ref, acc_ref = rest

    @pl.when(pl.program_id(2) == 0)
    def _():
        acc_ref[...] = jnp.zeros_like(acc_ref)

    a = x_ref[...]
    if has_affine:
        a32 = a.astype(jnp.float32)
        val = jnp.maximum(a32 * s_ref[...] + b_ref[...], 0.0)
        # -inf patch entries are the conv's spatial zero-padding expressed in
        # the *post*-BN domain -> force them to 0 for any sign of the scale.
        a = jnp.where(a32 != -jnp.inf, val, 0.0).astype(jnp.bfloat16)
    acc_ref[...] += jnp.dot(a, w_ref[...], preferred_element_type=jnp.float32)

    @pl.when(pl.program_id(2) == pl.num_programs(2) - 1)
    def _():
        acc = acc_ref[...]
        o_ref[...] = acc.astype(o_ref.dtype)
        s = jnp.sum(acc, axis=0, keepdims=True)
        q = jnp.sum(acc * acc, axis=0, keepdims=True)
        # (8, tn) blocks keep the (8,128)-tiling rule; glue reads row 0 only.
        sum_ref[...] = jnp.broadcast_to(s, sum_ref.shape)
        ssq_ref[...] = jnp.broadcast_to(q, ssq_ref.shape)


def matmul_bn_pallas(a, b, affine=None):
    """C = [relu(A*scale+bias)] @ B plus fused per-column sum / sum-of-squares.

    a: (M, K) bf16, b: (K, N) bf16.  affine: optional (scale, bias) f32 of
    length K applied (+ReLU) to A inside the kernel (-inf A entries -> 0).
    Returns (C (M,N) f32, col_sum (N,), col_sumsq (N,))."""
    M, K = a.shape
    K2, N = b.shape
    assert K == K2
    tm, Mp = _pick_tile(M, 512)
    tk = _pick_k_tile(K)
    if N <= 512:
        tn, Np = N, N
    else:
        tn, Np = 256, _round_up(N, 256)
        b = jnp.pad(b, ((0, 0), (0, Np - N)))
    padded_m = Mp != M
    if padded_m:
        a = jnp.pad(a, ((0, Mp - M), (0, 0)))
    gm, gn, gk = Mp // tm, Np // tn, K // tk

    kernel = functools.partial(_mm_kernel, has_affine=affine is not None)
    in_specs = [pl.BlockSpec((tm, tk), lambda i, j, k: (i, k)),
                pl.BlockSpec((tk, tn), lambda i, j, k: (k, j))]
    args = [a, b]
    if affine is not None:
        sk, bk = affine
        in_specs += [pl.BlockSpec((1, tk), lambda i, j, k: (0, k)),
                     pl.BlockSpec((1, tk), lambda i, j, k: (0, k))]
        args += [sk.reshape(1, K).astype(jnp.float32),
                 bk.reshape(1, K).astype(jnp.float32)]

    out, srows, qrows = pl.pallas_call(
        kernel,
        out_shape=(jax.ShapeDtypeStruct((Mp, Np), jnp.float32),
                   jax.ShapeDtypeStruct((gm * 8, Np), jnp.float32),
                   jax.ShapeDtypeStruct((gm * 8, Np), jnp.float32)),
        grid_spec=pltpu.PrefetchScalarGridSpec(
            num_scalar_prefetch=0,
            grid=(gm, gn, gk),
            in_specs=in_specs,
            out_specs=[pl.BlockSpec((tm, tn), lambda i, j, k: (i, j)),
                       pl.BlockSpec((8, tn), lambda i, j, k: (i, j)),
                       pl.BlockSpec((8, tn), lambda i, j, k: (i, j))],
            scratch_shapes=[pltpu.VMEM((tm, tn), jnp.float32)]),
        compiler_params=pltpu.CompilerParams(
            dimension_semantics=("parallel", "parallel", "arbitrary")),
    )(*args)

    out = out[:M, :N]
    if padded_m:
        # padded rows would contaminate the fused stats -> cheap glue fallback
        col_sum = jnp.sum(out, axis=0)
        col_ssq = jnp.sum(out * out, axis=0)
    else:
        col_sum = srows.reshape(gm, 8, Np)[:, 0, :N].sum(axis=0)
        col_ssq = qrows.reshape(gm, 8, Np)[:, 0, :N].sum(axis=0)
    return out, col_sum, col_ssq


# --------------------------------------------------------------------------
# Convolution = bf16 im2col (JAX glue) + fused Pallas MXU matmul.
# TODO(synk): a fully implicit (in-kernel tap accumulation) conv would remove
# the im2col materialization entirely; kept im2col (in bf16) for robustness.
# --------------------------------------------------------------------------
def _im2col(x, kh, kw, stride, pad, pad_value=0.0):
    x = x.astype(jnp.bfloat16)
    if pad:
        x = jnp.pad(x, ((0, 0), (pad, pad), (pad, pad), (0, 0)),
                    constant_values=pad_value)
    n, h, w, c = x.shape
    ho = (h - kh) // stride + 1
    wo = (w - kw) // stride + 1
    cols = []
    for i in range(kh):
        for j in range(kw):
            cols.append(lax.slice(
                x, (0, i, j, 0),
                (n, i + (ho - 1) * stride + 1, j + (wo - 1) * stride + 1, c),
                (1, stride, stride, 1)))
    patches = jnp.stack(cols, axis=3)          # (n, ho, wo, kh*kw, c)
    return patches.reshape(n * ho * wo, kh * kw * c), (n, ho, wo)


def conv_bn_raw(x, w, stride, pad, prologue=None):
    """Raw (pre-BatchNorm) conv output + fused per-channel batch statistics.
    prologue = (scale, bias) of the *input*'s BatchNorm, fused (+ReLU) into
    the matmul so the previous layer needs no separate normalization pass."""
    kh, kw, cin, cout = w.shape
    pad_value = -jnp.inf if prologue is not None else 0.0
    patches, dims = _im2col(x, kh, kw, stride, pad, pad_value)
    wmat = w.reshape(kh * kw * cin, cout).astype(jnp.bfloat16)
    affine = None
    if prologue is not None:
        s, b = prologue
        affine = (jnp.tile(s, kh * kw), jnp.tile(b, kh * kw))
    y, col_sum, col_ssq = matmul_bn_pallas(patches, wmat, affine)
    return y, dims, col_sum, col_ssq


def _bn_scale_bias(col_sum, col_ssq, count, gamma, beta, eps=1e-5):
    mean = col_sum / count
    var = jnp.maximum(col_ssq / count - mean * mean, 0.0)   # biased, train mode
    scale = gamma * lax.rsqrt(var + eps)
    return scale, beta - mean * scale


# --------------------------------------------------------------------------
# Lane packing helper: fold rows into the lane axis when C < 128 so the
# elementwise kernels store full 128-lane vregs (pure bitcast reshapes).
# --------------------------------------------------------------------------
def _lane_pack(mats, vecs):
    m, c = mats[0].shape[-2], mats[0].shape[-1]
    if c < 128 and 128 % c == 0 and m % (128 // c) == 0:
        f = 128 // c
        mats = [x.reshape(x.shape[:-2] + (m // f, c * f)) for x in mats]
        vecs = [jnp.tile(v.reshape(1, c), (1, f)) for v in vecs]
        return mats, vecs, f
    return mats, [v.reshape(1, c) for v in vecs], 1


# --------------------------------------------------------------------------
# Fused BasicBlock tail: relu( (a*sa+ba) + (b*sb+bb) )
#   a = raw conv2 output, b = raw downsample output (or identity with sb=1).
# --------------------------------------------------------------------------
def _res_bn_relu_kernel(a_ref, b_ref, sa_ref, ba_ref, sb_ref, bb_ref, o_ref):
    y = (a_ref[...] * sa_ref[...] + ba_ref[...]
         + b_ref[...] * sb_ref[...] + bb_ref[...])
    o_ref[...] = jnp.maximum(y, 0.0)


def residual_bn_relu(a, b, sa, ba, sb, bb):
    M, C = a.shape
    (a, b), (sa, ba, sb, bb), _ = _lane_pack([a, b], [sa, ba, sb, bb])
    Mq, Cp = a.shape
    tm, Mpad = _pick_tile(Mq, 1024)
    if Mpad != Mq:
        a = jnp.pad(a, ((0, Mpad - Mq), (0, 0)))
        b = jnp.pad(b, ((0, Mpad - Mq), (0, 0)))
    row = pl.BlockSpec((tm, Cp), lambda i: (i, 0))
    vec = pl.BlockSpec((1, Cp), lambda i: (0, 0))
    out = pl.pallas_call(
        _res_bn_relu_kernel,
        out_shape=jax.ShapeDtypeStruct((Mpad, Cp), jnp.float32),
        grid_spec=pltpu.PrefetchScalarGridSpec(
            num_scalar_prefetch=0,
            grid=(Mpad // tm,),
            in_specs=[row, row, vec, vec, vec, vec],
            out_specs=row),
        compiler_params=pltpu.CompilerParams(
            dimension_semantics=("parallel",)),
    )(a, b, sa, ba, sb, bb)
    return out[:Mq].reshape(M, C)


# --------------------------------------------------------------------------
# Fused stem tail: BatchNorm-affine + ReLU + MaxPool2d(3, stride=2, pad=1).
# The affine is applied per tap (robust to any scale sign); -inf marks pads.
# --------------------------------------------------------------------------
def _maxpool_bn_relu_kernel(x_ref, s_ref, b_ref, o_ref):
    s = s_ref[...]
    b = b_ref[...]
    m = None
    for t in range(x_ref.shape[0]):
        a = x_ref[t].astype(jnp.float32)
        v = jnp.where(a != -jnp.inf, a * s + b, -jnp.inf)
        m = v if m is None else jnp.maximum(m, v)
    o_ref[...] = jnp.maximum(m, 0.0)


def maxpool3x3s2_bn_relu(x, scale, bias):
    n, h, w, c = x.shape
    ho = (h + 2 - 3) // 2 + 1
    wo = (w + 2 - 3) // 2 + 1
    xp = jnp.pad(x.astype(jnp.bfloat16), ((0, 0), (1, 1), (1, 1), (0, 0)),
                 constant_values=-jnp.inf)
    views = []
    for i in range(3):
        for j in range(3):
            views.append(lax.slice(
                xp, (0, i, j, 0),
                (n, i + 2 * (ho - 1) + 1, j + 2 * (wo - 1) + 1, c),
                (1, 2, 2, 1)).reshape(n * ho * wo, c))
    stacked = jnp.stack(views, axis=0)                     # (9, M, C) bf16
    (stacked,), (s2, b2), _ = _lane_pack([stacked], [scale, bias])
    Mq, Cp = stacked.shape[1], stacked.shape[2]
    tm, Mpad = _pick_tile(Mq, 1024)
    if Mpad != Mq:
        stacked = jnp.pad(stacked, ((0, 0), (0, Mpad - Mq), (0, 0)),
                          constant_values=-jnp.inf)
    out = pl.pallas_call(
        _maxpool_bn_relu_kernel,
        out_shape=jax.ShapeDtypeStruct((Mpad, Cp), jnp.float32),
        grid_spec=pltpu.PrefetchScalarGridSpec(
            num_scalar_prefetch=0,
            grid=(Mpad // tm,),
            in_specs=[pl.BlockSpec((9, tm, Cp), lambda i: (0, i, 0)),
                      pl.BlockSpec((1, Cp), lambda i: (0, 0)),
                      pl.BlockSpec((1, Cp), lambda i: (0, 0))],
            out_specs=pl.BlockSpec((tm, Cp), lambda i: (i, 0))),
        compiler_params=pltpu.CompilerParams(
            dimension_semantics=("parallel",)),
    )(stacked, s2, b2)
    return out[:Mq].reshape(n, ho, wo, c)


# --------------------------------------------------------------------------
# Fused head: AvgPool2d(7, stride=1) + flatten + Linear in one tiny kernel.
# --------------------------------------------------------------------------
def _head_kernel(x_ref, w_ref, b_ref, o_ref):
    feat = jnp.mean(x_ref[...], axis=1)                    # (N, C)
    o_ref[...] = (jnp.dot(feat, w_ref[...],
                          preferred_element_type=jnp.float32) + b_ref[...])


def avgpool_fc(x, fc_w, fc_b):
    n, h, w, c = x.shape
    assert h == 7 and w == 7, "AvgPool2d(7, stride=1) needs a 7x7 feature map"
    nc = fc_w.shape[1]
    return pl.pallas_call(
        _head_kernel,
        out_shape=jax.ShapeDtypeStruct((n, nc), jnp.float32),
    )(x.reshape(n, h * w, c), fc_w.astype(jnp.float32),
      fc_b.reshape(1, nc).astype(jnp.float32))


# --------------------------------------------------------------------------
# BasicBlock (expansion = 1) and full ResNet forward
# --------------------------------------------------------------------------
def basic_block(x, p):
    stride = p['stride']
    # conv1 (raw) + fused batch stats
    y1, d1, s1, q1 = conv_bn_raw(x, p['w1'], stride, 1)
    m1 = d1[0] * d1[1] * d1[2]
    sc1, bi1 = _bn_scale_bias(s1, q1, m1, p['g1'], p['b1'])
    # conv2 with bn1+ReLU fused in as a matmul prologue
    y1_nhwc = y1.reshape(d1[0], d1[1], d1[2], -1)
    y2, d2, s2, q2 = conv_bn_raw(y1_nhwc, p['w2'], 1, 1, prologue=(sc1, bi1))
    m2 = d2[0] * d2[1] * d2[2]
    sc2, bi2 = _bn_scale_bias(s2, q2, m2, p['g2'], p['b2'])
    planes = p['w2'].shape[-1]
    # identity branch
    if p['wd'] is not None:
        yd, dd, sd, qd = conv_bn_raw(x, p['wd'], stride, 0)
        md = dd[0] * dd[1] * dd[2]
        scd, bid = _bn_scale_bias(sd, qd, md, p['gd'], p['bd'])
        ident = yd
    else:
        ident = x.reshape(-1, planes)
        scd = jnp.ones((planes,), jnp.float32)
        bid = jnp.zeros((planes,), jnp.float32)
    out = residual_bn_relu(y2, ident, sc2, bi2, scd, bid)
    return out.reshape(d2[0], d2[1], d2[2], planes)


def resnet_forward(x_nchw, params):
    # NCHW (PyTorch) -> NHWC (kernel layout)
    x = jnp.transpose(x_nchw, (0, 2, 3, 1)).astype(jnp.float32)
    # stem: conv 7x7/2 with fused stats, then bn1+ReLU fused into maxpool
    y, d, s, q = conv_bn_raw(x, params['conv1_w'], 2, 3)
    m = d[0] * d[1] * d[2]
    sc, bi = _bn_scale_bias(s, q, m, params['bn1_g'], params['bn1_b'])
    x = maxpool3x3s2_bn_relu(y.reshape(d[0], d[1], d[2], -1), sc, bi)
    for blocks in params['layers']:
        for blk in blocks:
            x = basic_block(x, blk)
    logits = avgpool_fc(x, params['fc_w'], params['fc_b'])
    # The PyTorch module also computes F.softmax(logits) but returns logits,
    # so the softmax is omitted (it does not affect the returned value).
    # TODO(synk): BatchNorm running-stat updates (training-mode side effect)
    # are not modeled; only the returned forward value is reproduced.
    return logits


# --------------------------------------------------------------------------
# Deterministic parameter initialization (mirrors the PyTorch __init__)
# --------------------------------------------------------------------------
def init_params(key, layers=(1, 1, 1, 1), num_classes=10, grayscale=True):
    in_dim = 1 if grayscale else 3
    keys = iter(jax.random.split(key, 64))

    def conv_init(kh, kw, cin, cout):
        n = kh * kw * cout
        return jax.random.normal(next(keys), (kh, kw, cin, cout),
                                 jnp.float32) * (2.0 / n) ** 0.5

    params = {
        'conv1_w': conv_init(7, 7, in_dim, 64),
        'bn1_g': jnp.ones((64,), jnp.float32),
        'bn1_b': jnp.zeros((64,), jnp.float32),
    }
    inplanes = 64
    layer_list = []
    for planes, nblocks, stride0 in zip((64, 128, 256, 512), layers,
                                        (1, 2, 2, 2)):
        blocks = []
        for bi in range(nblocks):
            st = stride0 if bi == 0 else 1
            blk = {
                'stride': st,
                'w1': conv_init(3, 3, inplanes, planes),
                'g1': jnp.ones((planes,), jnp.float32),
                'b1': jnp.zeros((planes,), jnp.float32),
                'w2': conv_init(3, 3, planes, planes),
                'g2': jnp.ones((planes,), jnp.float32),
                'b2': jnp.zeros((planes,), jnp.float32),
            }
            if st != 1 or inplanes != planes:
                blk['wd'] = conv_init(1, 1, inplanes, planes)
                blk['gd'] = jnp.ones((planes,), jnp.float32)
                blk['bd'] = jnp.zeros((planes,), jnp.float32)
            else:
                blk['wd'] = None
            blocks.append(blk)
            inplanes = planes
        layer_list.append(blocks)
    params['layers'] = layer_list
    # nn.Linear default init: U(-1/sqrt(fan_in), 1/sqrt(fan_in))
    bound = 1.0 / (512 ** 0.5)
    params['fc_w'] = jax.random.uniform(next(keys), (512, num_classes),
                                        jnp.float32, -bound, bound)
    params['fc_b'] = jax.random.uniform(next(keys), (num_classes,),
                                        jnp.float32, -bound, bound)
    return params


if __name__ == "__main__":
    key = jax.random.PRNGKey(0)
    pkey, xkey = jax.random.split(key)
    params = init_params(pkey, layers=(1, 1, 1, 1), num_classes=10,
                         grayscale=True)
    # AvgPool2d(7) feeding Linear(512, num_classes) requires a 7x7x512 map
    # after layer4, i.e. a 224x224 input; batch=2, 1 channel (grayscale).
    x = jax.random.normal(xkey, (2, 1, 224, 224), jnp.float32)
    logits = resnet_forward(x, params)
    logits = jax.block_until_ready(logits)
    assert logits.shape == (2, 10)
    assert bool(jnp.all(jnp.isfinite(logits)))
    print("KERNEL_OK")
</pallas_src>

<mosaic_0001>
module attributes {stable_mosaic.version = 11 : i64} {
  func.func @_mm_kernel(%arg0: i32, %arg1: i32, %arg2: i32, %arg3: memref<512x49xbf16, #tpu.memory_space<vmem>>, %arg4: memref<49x64xbf16, #tpu.memory_space<vmem>>, %arg5: memref<512x64xf32, #tpu.memory_space<vmem>>, %arg6: memref<8x64xf32, #tpu.memory_space<vmem>>, %arg7: memref<8x64xf32, #tpu.memory_space<vmem>>, %arg8: memref<512x64xf32, #tpu.memory_space<vmem>>) attributes {dimension_semantics = [#tpu.dimension_semantics<parallel>, #tpu.dimension_semantics<parallel>, #tpu.dimension_semantics<arbitrary>], iteration_bounds = array<i64: 49, 1, 1>, scalar_prefetch = 0 : i64, scratch_operands = 1 : i64, tpu.core_type = #tpu.core_type<tc>, window_params = [{transform_indices = @transform_0, window_bounds = array<i64: 512, 49>}, {transform_indices = @transform_1, window_bounds = array<i64: 49, 64>}, {transform_indices = @transform_2, window_bounds = array<i64: 512, 64>}, {transform_indices = @transform_3, window_bounds = array<i64: 8, 64>}, {transform_indices = @transform_4, window_bounds = array<i64: 8, 64>}]} {
    %c0_i32 = arith.constant 0 : i32
    %0 = arith.cmpi eq, %arg2, %c0_i32 : i32
    %1 = arith.extui %0 : i1 to i32
    %c0_i32_0 = arith.constant 0 : i32
    %2 = arith.cmpi ne, %1, %c0_i32_0 : i32
    scf.if %2 {
      %cst_10 = arith.constant 0.000000e+00 : f32
      %12 = vector.broadcast %cst_10 : f32 to vector<512x64xf32>
      %c0_11 = arith.constant 0 : index
      %c0_12 = arith.constant 0 : index
      %13 = vector.load %arg8[%c0_11, %c0_12] : memref<512x64xf32, #tpu.memory_space<vmem>>, vector<512x64xf32>
      tpu.vector_store %arg8[%c0_11, %c0_12], %12 {strides = array<i32>} : memref<512x64xf32, #tpu.memory_space<vmem>>, vector<512x64xf32>,
    } else {
    }
    %c0 = arith.constant 0 : index
    %c0_1 = arith.constant 0 : index
    %3 = vector.load %arg3[%c0, %c0_1] : memref<512x49xbf16, #tpu.memory_space<vmem>>, vector<512x49xbf16>
    %c0_2 = arith.constant 0 : index
    %c0_3 = arith.constant 0 : index
    %4 = vector.load %arg8[%c0_2, %c0_3] : memref<512x64xf32, #tpu.memory_space<vmem>>, vector<512x64xf32>
    %c0_4 = arith.constant 0 : index
    %c0_5 = arith.constant 0 : index
    %5 = vector.load %arg4[%c0_4, %c0_5] : memref<49x64xbf16, #tpu.memory_space<vmem>>, vector<49x64xbf16>
    %cst = arith.constant dense<0.000000e+00> : vector<512x64xf32>
    %6 = tpu.matmul %3, %5, %cst {dimension_numbers = #tpu.dot_dimension_numbers<[1], [0], [0], [1], [0, 0, 1, 1], [], []>} : vector<512x49xbf16>, vector<49x64xbf16>, vector<512x64xf32> -> vector<512x64xf32>
    %7 = arith.addf %4, %6 : vector<512x64xf32>
    %c0_6 = arith.constant 0 : index
    %c0_7 = arith.constant 0 : index
    %8 = vector.load %arg8[%c0_6, %c0_7] : memref<512x64xf32, #tpu.memory_space<vmem>>, vector<512x64xf32>
    tpu.vector_store %arg8[%c0_6, %c0_7], %7 {strides = array<i32>} : memref<512x64xf32, #tpu.memory_space<vmem>>, vector<512x64xf32>,
    %c0_i32_8 = arith.constant 0 : i32
    %9 = arith.cmpi eq, %arg2, %c0_i32_8 : i32
    %10 = arith.extui %9 : i1 to i32
    %c0_i32_9 = arith.constant 0 : i32
    %11 = arith.cmpi ne, %10, %c0_i32_9 : i32
    scf.if %11 {
      %c0_10 = arith.constant 0 : index
      %c0_11 = arith.constant 0 : index
      %12 = vector.load %arg8[%c0_10, %c0_11] : memref<512x64xf32, #tpu.memory_space<vmem>>, vector<512x64xf32>
      %c0_12 = arith.constant 0 : index
      %c0_13 = arith.constant 0 : index
      %13 = vector.load %arg5[%c0_12, %c0_13] : memref<512x64xf32, #tpu.memory_space<vmem>>, vector<512x64xf32>
      tpu.vector_store %arg5[%c0_12, %c0_13], %12 {strides = array<i32>} : memref<512x64xf32, #tpu.memory_space<vmem>>, vector<512x64xf32>,
      %cst_14 = arith.constant dense<0.000000e+00> : vector<64xf32>
      %14 = vector.multi_reduction <add>, %12, %cst_14 [0] : vector<512x64xf32> to vector<64xf32>
      %15 = vector.shape_cast %14 : vector<64xf32> to vector<1x64xf32>
      %16 = arith.mulf %12, %12 : vector<512x64xf32>
      %cst_15 = arith.constant dense<0.000000e+00> : vector<64xf32>
      %17 = vector.multi_reduction <add>, %16, %cst_15 [0] : vector<512x64xf32> to vector<64xf32>
      %18 = vector.shape_cast %17 : vector<64xf32> to vector<1x64xf32>
      %19 = vector.shape_cast %15 : vector<1x64xf32> to vector<1x64xf32>
      %20 = vector.broadcast %19 : vector<1x64xf32> to vector<8x64xf32>
      %c0_16 = arith.constant 0 : index
      %c0_17 = arith.constant 0 : index
      %21 = vector.load %arg6[%c0_16, %c0_17] : memref<8x64xf32, #tpu.memory_space<vmem>>, vector<8x64xf32>
      tpu.vector_store %arg6[%c0_16, %c0_17], %20 {strides = array<i32>} : memref<8x64xf32, #tpu.memory_space<vmem>>, vector<8x64xf32>,
      %22 = vector.shape_cast %18 : vector<1x64xf32> to vector<1x64xf32>
      %23 = vector.broadcast %22 : vector<1x64xf32> to vector<8x64xf32>
      %c0_18 = arith.constant 0 : index
      %c0_19 = arith.constant 0 : index
      %24 = vector.load %arg7[%c0_18, %c0_19] : memref<8x64xf32, #tpu.memory_space<vmem>>, vector<8x64xf32>
      tpu.vector_store %arg7[%c0_18, %c0_19], %23 {strides = array<i32>} : memref<8x64xf32, #tpu.memory_space<vmem>>, vector<8x64xf32>,
    } else {
    }
    return
  }
  func.func @transform_0(%arg0: i32, %arg1: i32, %arg2: i32) -> (i32, i32) {
    %c0_i32 = arith.constant 0 : i32
    return %arg0, %arg2 : i32, i32
  }
  func.func @transform_1(%arg0: i32, %arg1: i32, %arg2: i32) -> (i32, i32) {
    %c0_i32 = arith.constant 0 : i32
    return %arg2, %arg1 : i32, i32
  }
  func.func @transform_2(%arg0: i32, %arg1: i32, %arg2: i32) -> (i32, i32) {
    %c0_i32 = arith.constant 0 : i32
    return %arg0, %arg1 : i32, i32
  }
  func.func @transform_3(%arg0: i32, %arg1: i32, %arg2: i32) -> (i32, i32) {
    %c0_i32 = arith.constant 0 : i32
    return %arg0, %arg1 : i32, i32
  }
  func.func @transform_4(%arg0: i32, %arg1: i32, %arg2: i32) -> (i32, i32) {
    %c0_i32 = arith.constant 0 : i32
    return %arg0, %arg1 : i32, i32
  }
}

</mosaic_0001>

<llo_original>
// kernel: tpu_custom_call.1
$region0: #{tpu_custom_call.1}
  #allocation0 [shape = 'u32[]', space=smem, size = 0x4, offset = 0x4, fixed_abs, tag = 'smem constant byte address 0x4 - core index']
  #allocation1 [shape = 'u32[72,128]{1,0:T(1,128)}', space=vmem, size = 0x9000, scoped, tag = 'internal scratch']
  #allocation2 [shape = 'f32[512,64]{1,0:T(8,128)}', space=vmem, size = 0x40000, scoped, tag = 'scratch operand']
  %s0 = inlined_call_operand.vmem [shape: bf16[25088,49], index: 0, kind: input, shape index: {}]
  %s1 = inlined_call_operand.vmem [shape: bf16[49,64], index: 1, kind: input, shape index: {}]
  %s2 = inlined_call_operand.vmem [shape: f32[25088,64], index: 2, kind: output, shape index: {0}]
  %s3 = inlined_call_operand.vmem [shape: f32[392,64], index: 3, kind: output, shape index: {1}]
  %s4 = inlined_call_operand.vmem [shape: f32[392,64], index: 4, kind: output, shape index: {2}]
  %5 = xla_tuple %s2, %s3, %s4
  %s6 = sld [smem:[#allocation0]]
  $region65: #{tpu_custom_call.1} parent=0
    _
  %s8 = ssub.s32 1, %s6
  %s9 = scalar_select 0, %s8, %s6
  loop: start=0, step=1, limit=51
  $region2: #{tpu_custom_call.1} parent=0 // loop_pre_header
    _
  $region3: #{tpu_custom_call.1} parent=0 // loop_header
    %s11 = sphi 0, %s15
    %p12 = scmp.ge.s32.totalorder %s11, 51
    %s18 = sphi 0, %s37
    %s19 = sphi 0, %s33
    %s20 = sphi 0, %s29
    %s21 = sphi 0, %s18
    %s22 = sphi 0, %s19
    %s23 = sphi 0, %s20
    %s24 = sphi 0, %s21
    %s25 = sphi 0, %s22
    %s26 = sphi 0, %s23
    %s42 = sphi 0, %s44
    %s45 = sphi 0, %s42
    %s46 = sphi 0, %s45
    %s62 = sphi 0, %s46
    %s70 = sphi 0, %s72
    %s73 = sphi 0, %s70
    %s74 = sphi 0, %s73
    %s90 = sphi 0, %s74
    %s98 = sphi 0, %s100
    %s101 = sphi 0, %s98
    %s102 = sphi 0, %s101
    %s118 = sphi 0, %s102
    %s126 = sphi 0, %s128
    %s129 = sphi 0, %s126
    %s130 = sphi 0, %s129
    %s146 = sphi 0, %s130
    %s154 = sphi 0, %s156
    %s157 = sphi 0, %s154
    %s158 = sphi 0, %s157
    %s174 = sphi 0, %s158
  $region4: #{tpu_custom_call.1} parent=0 // loop_header_branch
    %14 = sbr.rel (%p12) target = $region8
  $region5: #{tpu_custom_call.1} parent=0 // loop_body
    %s16 = ssub.s32 %s11, 1
    %s17 = ssub.s32 %s11, 2
    %s27 = sadd.s32 1, %s20
    %p28 = scmp.ge.s32.totalorder %s27, 1
    %s29 = scalar_select %p28, 0, %s27
    %s30 = sadd.s32 1, %s19
    %s31 = scalar_select %p28, %s30, %s19
    %p32 = scmp.ge.s32.totalorder %s31, 1
    %s33 = scalar_select %p32, 0, %s31
    %s34 = sadd.s32 1, %s18
    %s35 = scalar_select %p32, %s34, %s18
    %p36 = scmp.ge.s32.totalorder %s35, 49
    %s37 = scalar_select %p36, 0, %s35
    %s38 = ssub.s32 %s18, %s37
    %s39 = ssub.s32 %s20, %s29
    %s40 = sor.u32 %s38, %s39
    %p41 = scmp.eq.s32.totalorder %s40, 0
    %s43 = sadd.s32 %s42, 1
    %s44 = scalar_select %p41, %s42, %s43
    %p47 = pneg %p41
    %p48 = scmp.eq.s32.totalorder %s11, 48
    %p49 = por %p47, %p48
    %p50 = scmp.ne.s32.totalorder %s42, %s45
    %p51 = scmp.eq.s32.totalorder %s11, 0
    %p52 = por %p50, %p51
    %p53 = scmp.ne.s32.totalorder %s42, %s45
    %p54 = scmp.eq.s32.totalorder %s16, 48
    %p55 = por %p53, %p54
    %p56 = scmp.ne.s32.totalorder %s45, %s46
    %p57 = scmp.eq.s32.totalorder %s16, 0
    %p58 = por %p56, %p57
    %p59 = scmp.ne.s32.totalorder %s45, %s46
    %p60 = scmp.eq.s32.totalorder %s17, 48
    %p61 = por %p59, %p60
    %p63 = scmp.ne.s32.totalorder %s46, %s62
    %p64 = scmp.eq.s32.totalorder %s17, 0
    %p65 = por %p63, %p64
    %s66 = ssub.s32 %s20, %s29
    %s67 = ssub.s32 %s19, %s33
    %s68 = sor.u32 %s66, %s67
    %p69 = scmp.eq.s32.totalorder %s68, 0
    %s71 = sadd.s32 %s70, 1
    %s72 = scalar_select %p69, %s70, %s71
    %p75 = pneg %p69
    %p76 = scmp.eq.s32.totalorder %s11, 48
    %p77 = por %p75, %p76
    %p78 = scmp.ne.s32.totalorder %s70, %s73
    %p79 = scmp.eq.s32.totalorder %s11, 0
    %p80 = por %p78, %p79
    %p81 = scmp.ne.s32.totalorder %s70, %s73
    %p82 = scmp.eq.s32.totalorder %s16, 48
    %p83 = por %p81, %p82
    %p84 = scmp.ne.s32.totalorder %s73, %s74
    %p85 = scmp.eq.s32.totalorder %s16, 0
    %p86 = por %p84, %p85
    %p87 = scmp.ne.s32.totalorder %s73, %s74
    %p88 = scmp.eq.s32.totalorder %s17, 48
    %p89 = por %p87, %p88
    %p91 = scmp.ne.s32.totalorder %s74, %s90
    %p92 = scmp.eq.s32.totalorder %s17, 0
    %p93 = por %p91, %p92
    %s94 = ssub.s32 %s18, %s37
    %s95 = ssub.s32 %s19, %s33
    %s96 = sor.u32 %s94, %s95
    %p97 = scmp.eq.s32.totalorder %s96, 0
    %s99 = sadd.s32 %s98, 1
    %s100 = scalar_select %p97, %s98, %s99
    %p103 = pneg %p97
    %p104 = scmp.eq.s32.totalorder %s11, 48
    %p105 = por %p103, %p104
    %p106 = scmp.ne.s32.totalorder %s98, %s101
    %p107 = scmp.eq.s32.totalorder %s11, 0
    %p108 = por %p106, %p107
    %p109 = scmp.ne.s32.totalorder %s98, %s101
    %p110 = scmp.eq.s32.totalorder %s16, 48
    %p111 = por %p109, %p110
    %p112 = scmp.ne.s32.totalorder %s101, %s102
    %p113 = scmp.eq.s32.totalorder %s16, 0
    %p114 = por %p112, %p113
    %p115 = scmp.ne.s32.totalorder %s101, %s102
    %p116 = scmp.eq.s32.totalorder %s17, 48
    %p117 = por %p115, %p116
    %p119 = scmp.ne.s32.totalorder %s102, %s118
    %p120 = scmp.eq.s32.totalorder %s17, 0
    %p121 = por %p119, %p120
    %s122 = ssub.s32 %s18, %s37
    %s123 = ssub.s32 %s19, %s33
    %s124 = sor.u32 %s122, %s123
    %p125 = scmp.eq.s32.totalorder %s124, 0
    %s127 = sadd.s32 %s126, 1
    %s128 = scalar_select %p125, %s126, %s127
    %p131 = pneg %p125
    %p132 = scmp.eq.s32.totalorder %s11, 48
    %p133 = por %p131, %p132
    %p134 = scmp.ne.s32.totalorder %s126, %s129
    %p135 = scmp.eq.s32.totalorder %s11, 0
    %p136 = por %p134, %p135
    %p137 = scmp.ne.s32.totalorder %s126, %s129
    %p138 = scmp.eq.s32.totalorder %s16, 48
    %p139 = por %p137, %p138
    %p140 = scmp.ne.s32.totalorder %s129, %s130
    %p141 = scmp.eq.s32.totalorder %s16, 0
    %p142 = por %p140, %p141
    %p143 = scmp.ne.s32.totalorder %s129, %s130
    %p144 = scmp.eq.s32.totalorder %s17, 48
    %p145 = por %p143, %p144
    %p147 = scmp.ne.s32.totalorder %s130, %s146
    %p148 = scmp.eq.s32.totalorder %s17, 0
    %p149 = por %p147, %p148
    %s150 = ssub.s32 %s18, %s37
    %s151 = ssub.s32 %s19, %s33
    %s152 = sor.u32 %s150, %s151
    %p153 = scmp.eq.s32.totalorder %s152, 0
    %s155 = sadd.s32 %s154, 1
    %s156 = scalar_select %p153, %s154, %s155
    %p159 = pneg %p153
    %p160 = scmp.eq.s32.totalorder %s11, 48
    %p161 = por %p159, %p160
    %p162 = scmp.ne.s32.totalorder %s154, %s157
    %p163 = scmp.eq.s32.totalorder %s11, 0
    %p164 = por %p162, %p163
    %p165 = scmp.ne.s32.totalorder %s154, %s157
    %p166 = scmp.eq.s32.totalorder %s16, 48
    %p167 = por %p165, %p166
    %p168 = scmp.ne.s32.totalorder %s157, %s158
    %p169 = scmp.eq.s32.totalorder %s16, 0
    %p170 = por %p168, %p169
    %p171 = scmp.ne.s32.totalorder %s157, %s158
    %p172 = scmp.eq.s32.totalorder %s17, 48
    %p173 = por %p171, %p172
    %p175 = scmp.ne.s32.totalorder %s158, %s174
    %p176 = scmp.eq.s32.totalorder %s17, 0
    %p177 = por %p175, %p176
    %p178 = scmp.le.s32.totalorder 1, %s11
    %p179 = scmp.lt.s32.totalorder %s11, 50
    %p180 = pnand %p178, %p179
    %p181 = pneg %p180
    // Predicated region
    $region9: #{tpu_custom_call.1} parent=5 // pred_check
      _
    $region10: #{tpu_custom_call.1} parent=5 // pred_check_branch
      %183 = sbr.rel (%p180) target = $region12
    $region11: #{tpu_custom_call.1} parent=5 // pred_region
      %s184 = ssub.s32 %s11, 1
      // Predicated region
      $region13: #{tpu_custom_call.1} parent=11 // pred_check
        %p185 = pneg %p86
      $region14: #{tpu_custom_call.1} parent=11 // pred_check_branch
        %187 = sbr.rel (%p185) target = $region16
      $region15: #{tpu_custom_call.1} parent=11 // pred_region
        %s188 = smul.u32 7, %s23
        %p189 = scmp.lt.s32.totalorder %s188, 6
        %s190 = scalar_select %p189, %s188, 6
        %p191 = scmp.lt.s32.totalorder %s22, 0
        %s192 = scalar_select %p191, %s22, 0
        %s193 = sadd.s32 %s192, %s190
        %s194 = smul.addr %s193, 4
        %s195 = scalar_lea.vmem %s1, %s194
        %s196 = smul.u32 7, %s23
      $region16: #{tpu_custom_call.1} parent=11 // pred_fallthru
        _
    $region12: #{tpu_custom_call.1} parent=5 // pred_fallthru
      _
    %p197 = scmp.lt.s32.totalorder %s11, 49
    // Predicated region
    $region17: #{tpu_custom_call.1} parent=5 // pred_check
      %p198 = pneg %p197
    $region18: #{tpu_custom_call.1} parent=5 // pred_check_branch
      %200 = sbr.rel (%p198) target = $region20
    $region19: #{tpu_custom_call.1} parent=5 // pred_region
      // Predicated region
      $region21: #{tpu_custom_call.1} parent=19 // pred_check
        %p201 = pneg %p52
      $region22: #{tpu_custom_call.1} parent=19 // pred_check_branch
        %203 = sbr.rel (%p201) target = $region24
      $region23: #{tpu_custom_call.1} parent=19 // pred_region
        %s204 = smul.u32 64, %s18
        %p205 = scmp.lt.s32.totalorder %s204, 3135
        %s206 = scalar_select %p205, %s204, 3135
        %p207 = scmp.lt.s32.totalorder %s20, 0
        %s208 = scalar_select %p207, %s20, 0
        %s209 = sadd.s32 %s208, %s206
        %s210 = smul.addr %s209, 4
        %s211 = scalar_lea.vmem %s0, %s210
        %s212 = smul.u32 64, %s18
      $region24: #{tpu_custom_call.1} parent=19 // pred_fallthru
        _
    $region20: #{tpu_custom_call.1} parent=5 // pred_fallthru
      _
    %p213 = scmp.le.s32.totalorder 1, %s11
    %p214 = scmp.lt.s32.totalorder %s11, 50
    %p215 = pnand %p213, %p214
    %p216 = pneg %p215
    // Predicated region
    $region25: #{tpu_custom_call.1} parent=5 // pred_check
      _
    $region26: #{tpu_custom_call.1} parent=5 // pred_check_branch
      %218 = sbr.rel (%p215) target = $region28
    $region27: #{tpu_custom_call.1} parent=5 // pred_region
      %s219 = ssub.s32 %s11, 1
      %s220 = smul.u32 64, %s21
      %p221 = scmp.lt.s32.totalorder %s220, 3135
      %s222 = scalar_select %p221, %s220, 3135
      %p223 = scmp.lt.s32.totalorder %s23, 0
      %s224 = scalar_select %p223, %s23, 0
      %s225 = sadd.s32 %s224, %s222
      %s226 = smul.addr %s225, 4
      %s227 = scalar_lea.vmem %s0, %s226
      %p228 = pneg %p58
      %p229 = pneg %p55
      %s230 = smul.u32 7, %s23
      %p231 = scmp.lt.s32.totalorder %s230, 6
      %s232 = scalar_select %p231, %s230, 6
      %p233 = scmp.lt.s32.totalorder %s22, 0
      %s234 = scalar_select %p233, %s22, 0
      %s235 = sadd.s32 %s234, %s232
      %s236 = smul.addr %s235, 4
      %s237 = scalar_lea.vmem %s1, %s236
      %p238 = pneg %p86
      %p239 = pneg %p83
      %p240 = pneg %p114
      %p241 = pneg %p111
      %s242 = smul.u32 64, %s21
      %p243 = scmp.lt.s32.totalorder %s242, 3135
      %s244 = scalar_select %p243, %s242, 3135
      %p245 = scmp.lt.s32.totalorder %s22, 0
      %s246 = scalar_select %p245, %s22, 0
      %s247 = sadd.s32 %s246, %s244
      %s248 = smul.addr %s247, 8
      %s249 = scalar_lea.vmem %s2, %s248
      %p250 = pneg %p142
      %p251 = pneg %p139
      %p252 = scmp.lt.s32.totalorder %s21, 48
      %s253 = scalar_select %p252, %s21, 48
      %p254 = scmp.lt.s32.totalorder %s22, 0
      %s255 = scalar_select %p254, %s22, 0
      %s256 = sadd.s32 %s255, %s253
      %s257 = smul.addr %s256, 8
      %s258 = scalar_lea.vmem %s3, %s257
      %p259 = pneg %p170
      %p260 = pneg %p167
      %p261 = scmp.lt.s32.totalorder %s21, 48
      %s262 = scalar_select %p261, %s21, 48
      %p263 = scmp.lt.s32.totalorder %s22, 0
      %s264 = scalar_select %p263, %s22, 0
      %s265 = sadd.s32 %s264, %s262
      %s266 = smul.addr %s265, 8
      %s267 = scalar_lea.vmem %s4, %s266
      %s268 = smul.u32 64, %s21
      %p269 = scmp.lt.s32.totalorder %s268, 3135
      %s270 = scalar_select %p269, %s268, 3135
      %p271 = scmp.lt.s32.totalorder %s23, 0
      %s272 = scalar_select %p271, %s23, 0
      %s273 = sadd.s32 %s272, %s270
      %s274 = smul.addr %s273, 4
      %s275 = scalar_lea.vmem %s0, %s274
      %s276 = smul.u32 64, %s21
      %s277 = smul.u32 7, %s23
      %p278 = scmp.lt.s32.totalorder %s277, 6
      %s279 = scalar_select %p278, %s277, 6
      %p280 = scmp.lt.s32.totalorder %s22, 0
      %s281 = scalar_select %p280, %s22, 0
      %s282 = sadd.s32 %s281, %s279
      %s283 = smul.addr %s282, 4
      %s284 = scalar_lea.vmem %s1, %s283
      %s285 = smul.u32 7, %s23
      %s286 = smul.u32 64, %s21
      %p287 = scmp.lt.s32.totalorder %s286, 3135
      %s288 = scalar_select %p287, %s286, 3135
      %p289 = scmp.lt.s32.totalorder %s22, 0
      %s290 = scalar_select %p289, %s22, 0
      %s291 = sadd.s32 %s290, %s288
      %s292 = smul.addr %s291, 8
      %s293 = scalar_lea.vmem %s2, %s292
      %s294 = smul.u32 64, %s21
      %p295 = scmp.lt.s32.totalorder %s21, 48
      %s296 = scalar_select %p295, %s21, 48
      %p297 = scmp.lt.s32.totalorder %s22, 0
      %s298 = scalar_select %p297, %s22, 0
      %s299 = sadd.s32 %s298, %s296
      %s300 = smul.addr %s299, 8
      %s301 = scalar_lea.vmem %s3, %s300
      %p302 = scmp.lt.s32.totalorder %s21, 48
      %s303 = scalar_select %p302, %s21, 48
      %p304 = scmp.lt.s32.totalorder %s22, 0
      %s305 = scalar_select %p304, %s22, 0
      %s306 = sadd.s32 %s305, %s303
      %s307 = smul.addr %s306, 8
      %s308 = scalar_lea.vmem %s4, %s307
      %p310 = scmp.eq.s32.totalorder %s23, 0
      // Predicated region
      $region29: #{tpu_custom_call.1} parent=27 // pred_check
        %p311 = pneg %p310
      $region30: #{tpu_custom_call.1} parent=27 // pred_check_branch
        %313 = sbr.rel (%p311) target = $region32
      $region31: #{tpu_custom_call.1} parent=27 // pred_region
        %vm314 = vcmask 523264
        %315 = vst.msk [vmem:[#allocation2] sm:$0xff] %vm314, 0.0
        %316 = vst.msk [vmem:[#allocation2 + $0x8] sm:$0xff] %vm314, 0.0
        %317 = vst.msk [vmem:[#allocation2 + $0x10] sm:$0xff] %vm314, 0.0
        %318 = vst.msk [vmem:[#allocation2 + $0x18] sm:$0xff] %vm314, 0.0
        %319 = vst.msk [vmem:[#allocation2 + $0x20] sm:$0xff] %vm314, 0.0
        %320 = vst.msk [vmem:[#allocation2 + $0x28] sm:$0xff] %vm314, 0.0
        %321 = vst.msk [vmem:[#allocation2 + $0x30] sm:$0xff] %vm314, 0.0
        %322 = vst.msk [vmem:[#allocation2 + $0x38] sm:$0xff] %vm314, 0.0
        %323 = vst.msk [vmem:[#allocation2 + $0x40] sm:$0xff] %vm314, 0.0
        %324 = vst.msk [vmem:[#allocation2 + $0x48] sm:$0xff] %vm314, 0.0
        %325 = vst.msk [vmem:[#allocation2 + $0x50] sm:$0xff] %vm314, 0.0
        %326 = vst.msk [vmem:[#allocation2 + $0x58] sm:$0xff] %vm314, 0.0
        %327 = vst.msk [vmem:[#allocation2 + $0x60] sm:$0xff] %vm314, 0.0
        %328 = vst.msk [vmem:[#allocation2 + $0x68] sm:$0xff] %vm314, 0.0
        %329 = vst.msk [vmem:[#allocation2 + $0x70] sm:$0xff] %vm314, 0.0
        %330 = vst.msk [vmem:[#allocation2 + $0x78] sm:$0xff] %vm314, 0.0
        %331 = vst.msk [vmem:[#allocation2 + $0x80] sm:$0xff] %vm314, 0.0
        %332 = vst.msk [vmem:[#allocation2 + $0x88] sm:$0xff] %vm314, 0.0
        %333 = vst.msk [vmem:[#allocation2 + $0x90] sm:$0xff] %vm314, 0.0
        %334 = vst.msk [vmem:[#allocation2 + $0x98] sm:$0xff] %vm314, 0.0
        %335 = vst.msk [vmem:[#allocation2 + $0xa0] sm:$0xff] %vm314, 0.0
        %336 = vst.msk [vmem:[#allocation2 + $0xa8] sm:$0xff] %vm314, 0.0
        %337 = vst.msk [vmem:[#allocation2 + $0xb0] sm:$0xff] %vm314, 0.0
        %338 = vst.msk [vmem:[#allocation2 + $0xb8] sm:$0xff] %vm314, 0.0
        %339 = vst.msk [vmem:[#allocation2 + $0xc0] sm:$0xff] %vm314, 0.0
        %340 = vst.msk [vmem:[#allocation2 + $0xc8] sm:$0xff] %vm314, 0.0
        %341 = vst.msk [vmem:[#allocation2 + $0xd0] sm:$0xff] %vm314, 0.0
        %342 = vst.msk [vmem:[#allocation2 + $0xd8] sm:$0xff] %vm314, 0.0
        %343 = vst.msk [vmem:[#allocation2 + $0xe0] sm:$0xff] %vm314, 0.0
        %344 = vst.msk [vmem:[#allocation2 + $0xe8] sm:$0xff] %vm314, 0.0
        %345 = vst.msk [vmem:[#allocation2 + $0xf0] sm:$0xff] %vm314, 0.0
        %346 = vst.msk [vmem:[#allocation2 + $0xf8] sm:$0xff] %vm314, 0.0
        %347 = vst.msk [vmem:[#allocation2 + $0x100] sm:$0xff] %vm314, 0.0
        %348 = vst.msk [vmem:[#allocation2 + $0x108] sm:$0xff] %vm314, 0.0
        %349 = vst.msk [vmem:[#allocation2 + $0x110] sm:$0xff] %vm314, 0.0
        %350 = vst.msk [vmem:[#allocation2 + $0x118] sm:$0xff] %vm314, 0.0
        %351 = vst.msk [vmem:[#allocation2 + $0x120] sm:$0xff] %vm314, 0.0
        %352 = vst.msk [vmem:[#allocation2 + $0x128] sm:$0xff] %vm314, 0.0
        %353 = vst.msk [vmem:[#allocation2 + $0x130] sm:$0xff] %vm314, 0.0
        %354 = vst.msk [vmem:[#allocation2 + $0x138] sm:$0xff] %vm314, 0.0
        %355 = vst.msk [vmem:[#allocation2 + $0x140] sm:$0xff] %vm314, 0.0
        %356 = vst.msk [vmem:[#allocation2 + $0x148] sm:$0xff] %vm314, 0.0
        %357 = vst.msk [vmem:[#allocation2 + $0x150] sm:$0xff] %vm314, 0.0
        %358 = vst.msk [vmem:[#allocation2 + $0x158] sm:$0xff] %vm314, 0.0
        %359 = vst.msk [vmem:[#allocation2 + $0x160] sm:$0xff] %vm314, 0.0
        %360 = vst.msk [vmem:[#allocation2 + $0x168] sm:$0xff] %vm314, 0.0
        %361 = vst.msk [vmem:[#allocation2 + $0x170] sm:$0xff] %vm314, 0.0
        %362 = vst.msk [vmem:[#allocation2 + $0x178] sm:$0xff] %vm314, 0.0
        %363 = vst.msk [vmem:[#allocation2 + $0x180] sm:$0xff] %vm314, 0.0
        %364 = vst.msk [vmem:[#allocation2 + $0x188] sm:$0xff] %vm314, 0.0
        %365 = vst.msk [vmem:[#allocation2 + $0x190] sm:$0xff] %vm314, 0.0
        %366 = vst.msk [vmem:[#allocation2 + $0x198] sm:$0xff] %vm314, 0.0
        %367 = vst.msk [vmem:[#allocation2 + $0x1a0] sm:$0xff] %vm314, 0.0
        %368 = vst.msk [vmem:[#allocation2 + $0x1a8] sm:$0xff] %vm314, 0.0
        %369 = vst.msk [vmem:[#allocation2 + $0x1b0] sm:$0xff] %vm314, 0.0
        %370 = vst.msk [vmem:[#allocation2 + $0x1b8] sm:$0xff] %vm314, 0.0
        %371 = vst.msk [vmem:[#allocation2 + $0x1c0] sm:$0xff] %vm314, 0.0
        %372 = vst.msk [vmem:[#allocation2 + $0x1c8] sm:$0xff] %vm314, 0.0
        %373 = vst.msk [vmem:[#allocation2 + $0x1d0] sm:$0xff] %vm314, 0.0
        %374 = vst.msk [vmem:[#allocation2 + $0x1d8] sm:$0xff] %vm314, 0.0
        %375 = vst.msk [vmem:[#allocation2 + $0x1e0] sm:$0xff] %vm314, 0.0
        %376 = vst.msk [vmem:[#allocation2 + $0x1e8] sm:$0xff] %vm314, 0.0
        %377 = vst.msk [vmem:[#allocation2 + $0x1f0] sm:$0xff] %vm314, 0.0
        %378 = vst.msk [vmem:[#allocation2 + $0x1f8] sm:$0xff] %vm314, 0.0
      $region32: #{tpu_custom_call.1} parent=27 // pred_fallthru
        _
      %v379 = vld [vmem:[%s275] sm:$0xf]
      %v380 = vld [vmem:[%s275 + $0x4] sm:$0xf]
      %v381 = vld [vmem:[%s275 + $0x8] sm:$0xf]
      %v382 = vld [vmem:[%s275 + $0xc] sm:$0xf]
      %v383 = vld [vmem:[%s275 + $0x10] sm:$0xf]
      %v384 = vld [vmem:[%s275 + $0x14] sm:$0xf]
      %v385 = vld [vmem:[%s275 + $0x18] sm:$0xf]
      %v386 = vld [vmem:[%s275 + $0x1c] sm:$0xf]
      %v387 = vld [vmem:[%s275 + $0x20] sm:$0xf]
      %v388 = vld [vmem:[%s275 + $0x24] sm:$0xf]
      %v389 = vld [vmem:[%s275 + $0x28] sm:$0xf]
      %v390 = vld [vmem:[%s275 + $0x2c] sm:$0xf]
      %v391 = vld [vmem:[%s275 + $0x30] sm:$0xf]
      %v392 = vld [vmem:[%s275 + $0x34] sm:$0xf]
      %v393 = vld [vmem:[%s275 + $0x38] sm:$0xf]
      %v394 = vld [vmem:[%s275 + $0x3c] sm:$0xf]
      %v395 = vld [vmem:[%s275 + $0x40] sm:$0xf]
      %v396 = vld [vmem:[%s275 + $0x44] sm:$0xf]
      %v397 = vld [vmem:[%s275 + $0x48] sm:$0xf]
      %v398 = vld [vmem:[%s275 + $0x4c] sm:$0xf]
      %v399 = vld [vmem:[%s275 + $0x50] sm:$0xf]
      %v400 = vld [vmem:[%s275 + $0x54] sm:$0xf]
      %v401 = vld [vmem:[%s275 + $0x58] sm:$0xf]
      %v402 = vld [vmem:[%s275 + $0x5c] sm:$0xf]
      %v403 = vld [vmem:[%s275 + $0x60] sm:$0xf]
      %v404 = vld [vmem:[%s275 + $0x64] sm:$0xf]
      %v405 = vld [vmem:[%s275 + $0x68] sm:$0xf]
      %v406 = vld [vmem:[%s275 + $0x6c] sm:$0xf]
      %v407 = vld [vmem:[%s275 + $0x70] sm:$0xf]
      %v408 = vld [vmem:[%s275 + $0x74] sm:$0xf]
      %v409 = vld [vmem:[%s275 + $0x78] sm:$0xf]
      %v410 = vld [vmem:[%s275 + $0x7c] sm:$0xf]
      %v411 = vld [vmem:[%s275 + $0x80] sm:$0xf]
      %v412 = vld [vmem:[%s275 + $0x84] sm:$0xf]
      %v413 = vld [vmem:[%s275 + $0x88] sm:$0xf]
      %v414 = vld [vmem:[%s275 + $0x8c] sm:$0xf]
      %v415 = vld [vmem:[%s275 + $0x90] sm:$0xf]
      %v416 = vld [vmem:[%s275 + $0x94] sm:$0xf]
      %v417 = vld [vmem:[%s275 + $0x98] sm:$0xf]
      %v418 = vld [vmem:[%s275 + $0x9c] sm:$0xf]
      %v419 = vld [vmem:[%s275 + $0xa0] sm:$0xf]
      %v420 = vld [vmem:[%s275 + $0xa4] sm:$0xf]
      %v421 = vld [vmem:[%s275 + $0xa8] sm:$0xf]
      %v422 = vld [vmem:[%s275 + $0xac] sm:$0xf]
      %v423 = vld [vmem:[%s275 + $0xb0] sm:$0xf]
      %v424 = vld [vmem:[%s275 + $0xb4] sm:$0xf]
      %v425 = vld [vmem:[%s275 + $0xb8] sm:$0xf]
      %v426 = vld [vmem:[%s275 + $0xbc] sm:$0xf]
      %v427 = vld [vmem:[%s275 + $0xc0] sm:$0xf]
      %v428 = vld [vmem:[%s275 + $0xc4] sm:$0xf]
      %v429 = vld [vmem:[%s275 + $0xc8] sm:$0xf]
      %v430 = vld [vmem:[%s275 + $0xcc] sm:$0xf]
      %v431 = vld [vmem:[%s275 + $0xd0] sm:$0xf]
      %v432 = vld [vmem:[%s275 + $0xd4] sm:$0xf]
      %v433 = vld [vmem:[%s275 + $0xd8] sm:$0xf]
      %v434 = vld [vmem:[%s275 + $0xdc] sm:$0xf]
      %v435 = vld [vmem:[%s275 + $0xe0] sm:$0xf]
      %v436 = vld [vmem:[%s275 + $0xe4] sm:$0xf]
      %v437 = vld [vmem:[%s275 + $0xe8] sm:$0xf]
      %v438 = vld [vmem:[%s275 + $0xec] sm:$0xf]
      %v439 = vld [vmem:[%s275 + $0xf0] sm:$0xf]
      %v440 = vld [vmem:[%s275 + $0xf4] sm:$0xf]
      %v441 = vld [vmem:[%s275 + $0xf8] sm:$0xf]
      %v442 = vld [vmem:[%s275 + $0xfc] sm:$0xf]
      %v443 = vld [vmem:[#allocation2] sm:$0xff]
      %v444 = vld [vmem:[#allocation2 + $0x8] sm:$0xff]
      %v445 = vld [vmem:[#allocation2 + $0x10] sm:$0xff]
      %v446 = vld [vmem:[#allocation2 + $0x18] sm:$0xff]
      %v447 = vld [vmem:[#allocation2 + $0x20] sm:$0xff]
      %v448 = vld [vmem:[#allocation2 + $0x28] sm:$0xff]
      %v449 = vld [vmem:[#allocation2 + $0x30] sm:$0xff]
      %v450 = vld [vmem:[#allocation2 + $0x38] sm:$0xff]
      %v451 = vld [vmem:[#allocation2 + $0x40] sm:$0xff]
      %v452 = vld [vmem:[#allocation2 + $0x48] sm:$0xff]
      %v453 = vld [vmem:[#allocation2 + $0x50] sm:$0xff]
      %v454 = vld [vmem:[#allocation2 + $0x58] sm:$0xff]
      %v455 = vld [vmem:[#allocation2 + $0x60] sm:$0xff]
      %v456 = vld [vmem:[#allocation2 + $0x68] sm:$0xff]
      %v457 = vld [vmem:[#allocation2 + $0x70] sm:$0xff]
      %v458 = vld [vmem:[#allocation2 + $0x78] sm:$0xff]
      %v459 = vld [vmem:[#allocation2 + $0x80] sm:$0xff]
      %v460 = vld [vmem:[#allocation2 + $0x88] sm:$0xff]
      %v461 = vld [vmem:[#allocation2 + $0x90] sm:$0xff]
      %v462 = vld [vmem:[#allocation2 + $0x98] sm:$0xff]
      %v463 = vld [vmem:[#allocation2 + $0xa0] sm:$0xff]
      %v464 = vld [vmem:[#allocation2 + $0xa8] sm:$0xff]
      %v465 = vld [vmem:[#allocation2 + $0xb0] sm:$0xff]
      %v466 = vld [vmem:[#allocation2 + $0xb8] sm:$0xff]
      %v467 = vld [vmem:[#allocation2 + $0xc0] sm:$0xff]
      %v468 = vld [vmem:[#allocation2 + $0xc8] sm:$0xff]
      %v469 = vld [vmem:[#allocation2 + $0xd0] sm:$0xff]
      %v470 = vld [vmem:[#allocation2 + $0xd8] sm:$0xff]
      %v471 = vld [vmem:[#allocation2 + $0xe0] sm:$0xff]
      %v472 = vld [vmem:[#allocation2 + $0xe8] sm:$0xff]
      %v473 = vld [vmem:[#allocation2 + $0xf0] sm:$0xff]
      %v474 = vld [vmem:[#allocation2 + $0xf8] sm:$0xff]
      %v475 = vld [vmem:[#allocation2 + $0x100] sm:$0xff]
      %v476 = vld [vmem:[#allocation2 + $0x108] sm:$0xff]
      %v477 = vld [vmem:[#allocation2 + $0x110] sm:$0xff]
      %v478 = vld [vmem:[#allocation2 + $0x118] sm:$0xff]
      %v479 = vld [vmem:[#allocation2 + $0x120] sm:$0xff]
      %v480 = vld [vmem:[#allocation2 + $0x128] sm:$0xff]
      %v481 = vld [vmem:[#allocation2 + $0x130] sm:$0xff]
      %v482 = vld [vmem:[#allocation2 + $0x138] sm:$0xff]
      %v483 = vld [vmem:[#allocation2 + $0x140] sm:$0xff]
      %v484 = vld [vmem:[#allocation2 + $0x148] sm:$0xff]
      %v485 = vld [vmem:[#allocation2 + $0x150] sm:$0xff]
      %v486 = vld [vmem:[#allocation2 + $0x158] sm:$0xff]
      %v487 = vld [vmem:[#allocation2 + $0x160] sm:$0xff]
      %v488 = vld [vmem:[#allocation2 + $0x168] sm:$0xff]
      %v489 = vld [vmem:[#allocation2 + $0x170] sm:$0xff]
      %v490 = vld [vmem:[#allocation2 + $0x178] sm:$0xff]
      %v491 = vld [vmem:[#allocation2 + $0x180] sm:$0xff]
      %v492 = vld [vmem:[#allocation2 + $0x188] sm:$0xff]
      %v493 = vld [vmem:[#allocation2 + $0x190] sm:$0xff]
      %v494 = vld [vmem:[#allocation2 + $0x198] sm:$0xff]
      %v495 = vld [vmem:[#allocation2 + $0x1a0] sm:$0xff]
      %v496 = vld [vmem:[#allocation2 + $0x1a8] sm:$0xff]
      %v497 = vld [vmem:[#allocation2 + $0x1b0] sm:$0xff]
      %v498 = vld [vmem:[#allocation2 + $0x1b8] sm:$0xff]
      %v499 = vld [vmem:[#allocation2 + $0x1c0] sm:$0xff]
      %v500 = vld [vmem:[#allocation2 + $0x1c8] sm:$0xff]
      %v501 = vld [vmem:[#allocation2 + $0x1d0] sm:$0xff]
      %v502 = vld [vmem:[#allocation2 + $0x1d8] sm:$0xff]
      %v503 = vld [vmem:[#allocation2 + $0x1e0] sm:$0xff]
      %v504 = vld [vmem:[#allocation2 + $0x1e8] sm:$0xff]
      %v505 = vld [vmem:[#allocation2 + $0x1f0] sm:$0xff]
      %v506 = vld [vmem:[#allocation2 + $0x1f8] sm:$0xff]
      %v507 = vld [vmem:[%s284] sm:$0xf]
      %v508 = vld [vmem:[%s284 + $0x4] sm:$0xf]
      %v509 = vld [vmem:[%s284 + $0x8] sm:$0xf]
      %v510 = vld [vmem:[%s284 + $0xc] sm:$0xf]
      %v511 = vld [vmem:[%s284 + $0x10] sm:$0xf]
      %v512 = vld [vmem:[%s284 + $0x14] sm:$0xf]
      %v513 = vld [vmem:[%s284 + $0x18] sm:$0x1]
      %v578 = vunpack.c.l.b16 %v379
      %v579 = vunpack.c.l.b16 %v380
      %v580 = vunpack.c.l.b16 %v381
      %v581 = vunpack.c.l.b16 %v382
      %v582 = vunpack.c.l.b16 %v383
      %v583 = vunpack.c.l.b16 %v384
      %v584 = vunpack.c.l.b16 %v385
      %v585 = vunpack.c.l.b16 %v386
      %v586 = vunpack.c.l.b16 %v387
      %v587 = vunpack.c.l.b16 %v388
      %v588 = vunpack.c.l.b16 %v389
      %v589 = vunpack.c.l.b16 %v390
      %v590 = vunpack.c.l.b16 %v391
      %v591 = vunpack.c.l.b16 %v392
      %v592 = vunpack.c.l.b16 %v393
      %v593 = vunpack.c.l.b16 %v394
      %v594 = vunpack.c.l.b16 %v395
      %v595 = vunpack.c.l.b16 %v396
      %v596 = vunpack.c.l.b16 %v397
      %v597 = vunpack.c.l.b16 %v398
      %v598 = vunpack.c.l.b16 %v399
      %v599 = vunpack.c.l.b16 %v400
      %v600 = vunpack.c.l.b16 %v401
      %v601 = vunpack.c.l.b16 %v402
      %v602 = vunpack.c.l.b16 %v403
      %v603 = vunpack.c.l.b16 %v404
      %v604 = vunpack.c.l.b16 %v405
      %v605 = vunpack.c.l.b16 %v406
      %v606 = vunpack.c.l.b16 %v407
      %v607 = vunpack.c.l.b16 %v408
      %v608 = vunpack.c.l.b16 %v409
      %v609 = vunpack.c.l.b16 %v410
      %v610 = vunpack.c.l.b16 %v411
      %v611 = vunpack.c.l.b16 %v412
      %v612 = vunpack.c.l.b16 %v413
      %v613 = vunpack.c.l.b16 %v414
      %v614 = vunpack.c.l.b16 %v415
      %v615 = vunpack.c.l.b16 %v416
      %v616 = vunpack.c.l.b16 %v417
      %v617 = vunpack.c.l.b16 %v418
      %v618 = vunpack.c.l.b16 %v419
      %v619 = vunpack.c.l.b16 %v420
      %v620 = vunpack.c.l.b16 %v421
      %v621 = vunpack.c.l.b16 %v422
      %v622 = vunpack.c.l.b16 %v423
      %v623 = vunpack.c.l.b16 %v424
      %v624 = vunpack.c.l.b16 %v425
      %v625 = vunpack.c.l.b16 %v426
      %v626 = vunpack.c.l.b16 %v427
      %v627 = vunpack.c.l.b16 %v428
      %v628 = vunpack.c.l.b16 %v429
      %v629 = vunpack.c.l.b16 %v430
      %v630 = vunpack.c.l.b16 %v431
      %v631 = vunpack.c.l.b16 %v432
      %v632 = vunpack.c.l.b16 %v433
      %v633 = vunpack.c.l.b16 %v434
      %v634 = vunpack.c.l.b16 %v435
      %v635 = vunpack.c.l.b16 %v436
      %v636 = vunpack.c.l.b16 %v437
      %v637 = vunpack.c.l.b16 %v438
      %v638 = vunpack.c.l.b16 %v439
      %v639 = vunpack.c.l.b16 %v440
      %v640 = vunpack.c.l.b16 %v441
      %v641 = vunpack.c.l.b16 %v442
      %v642 = vpack.c.b16 %v579, %v578
      %v643 = vpack.c.b16 %v581, %v580
      %v644 = vpack.c.b16 %v583, %v582
      %v645 = vpack.c.b16 %v585, %v584
      %v646 = vpack.c.b16 %v587, %v586
      %v647 = vpack.c.b16 %v589, %v588
      %v648 = vpack.c.b16 %v591, %v590
      %v649 = vpack.c.b16 %v593, %v592
      %v650 = vpack.c.b16 %v595, %v594
      %v651 = vpack.c.b16 %v597, %v596
      %v652 = vpack.c.b16 %v599, %v598
      %v653 = vpack.c.b16 %v601, %v600
      %v654 = vpack.c.b16 %v603, %v602
      %v655 = vpack.c.b16 %v605, %v604
      %v656 = vpack.c.b16 %v607, %v606
      %v657 = vpack.c.b16 %v609, %v608
      %v658 = vpack.c.b16 %v611, %v610
      %v659 = vpack.c.b16 %v613, %v612
      %v660 = vpack.c.b16 %v615, %v614
      %v661 = vpack.c.b16 %v617, %v616
      %v662 = vpack.c.b16 %v619, %v618
      %v663 = vpack.c.b16 %v621, %v620
      %v664 = vpack.c.b16 %v623, %v622
      %v665 = vpack.c.b16 %v625, %v624
      %v666 = vpack.c.b16 %v627, %v626
      %v667 = vpack.c.b16 %v629, %v628
      %v668 = vpack.c.b16 %v631, %v630
      %v669 = vpack.c.b16 %v633, %v632
      %v670 = vpack.c.b16 %v635, %v634
      %v671 = vpack.c.b16 %v637, %v636
      %v672 = vpack.c.b16 %v639, %v638
      %v673 = vpack.c.b16 %v641, %v640
      %v681 = vunpack.c.l.b16 %v507
      %v682 = vunpack.c.l.b16 %v508
      %v683 = vunpack.c.l.b16 %v509
      %v684 = vunpack.c.l.b16 %v510
      %v685 = vunpack.c.l.b16 %v511
      %v686 = vunpack.c.l.b16 %v512
      %v687 = vunpack.c.l.b16 %v513
      %v688 = vpack.c.b16 %v682, %v681
      %v689 = vpack.c.b16 %v684, %v683
      %v690 = vpack.c.b16 %v686, %v685
      %v691 = vpack.c.b16 %v687, %v687
      %vm695 = vcmask 400384
      %v697 = vsel %vm695, %v642, 0
      %v700 = vsel %vm695, %v643, 0
      %v703 = vsel %vm695, %v644, 0
      %v706 = vsel %vm695, %v645, 0
      %v709 = vsel %vm695, %v646, 0
      %v712 = vsel %vm695, %v647, 0
      %v715 = vsel %vm695, %v648, 0
      %v718 = vsel %vm695, %v649, 0
      %v721 = vsel %vm695, %v650, 0
      %v724 = vsel %vm695, %v651, 0
      %v727 = vsel %vm695, %v652, 0
      %v730 = vsel %vm695, %v653, 0
      %v733 = vsel %vm695, %v654, 0
      %v736 = vsel %vm695, %v655, 0
      %v739 = vsel %vm695, %v656, 0
      %v742 = vsel %vm695, %v657, 0
      %v745 = vsel %vm695, %v658, 0
      %v748 = vsel %vm695, %v659, 0
      %v751 = vsel %vm695, %v660, 0
      %v754 = vsel %vm695, %v661, 0
      %v757 = vsel %vm695, %v662, 0
      %v760 = vsel %vm695, %v663, 0
      %v763 = vsel %vm695, %v664, 0
      %v766 = vsel %vm695, %v665, 0
      %v769 = vsel %vm695, %v666, 0
      %v772 = vsel %vm695, %v667, 0
      %v775 = vsel %vm695, %v668, 0
      %v778 = vsel %vm695, %v669, 0
      %v781 = vsel %vm695, %v670, 0
      %v784 = vsel %vm695, %v671, 0
      %v787 = vsel %vm695, %v672, 0
      %v790 = vsel %vm695, %v673, 0
      %vm792 = vcmask 1040384
      %v793 = vsel 0, 4294967295, 65535
      %v794 = vsel %vm792, %v793, 0
      %v796 = vand.u32 %v691, %v794
      %798 = vmatpush.bf16.msra.mxu0 0
      %799 = vmatpush.bf16.msra.mxu0 0
      %800 = vmatpush.bf16.msra.mxu0 0
      %801 = vmatpush.bf16.msra.mxu0 0
      %802 = vmatpush.bf16.msra.mxu0 %v796
      %803 = vmatpush.bf16.msra.mxu0 %v690
      %804 = vmatpush.bf16.msra.mxu0 %v689
      %805 = vmatpush.bf16.msra.mxu0 %v688
      %806 = vmatmul.bf16.gmra.mxu0 %v697
      %v807 = vpop.f32.mrf.mxu0
      %v808 = vadd.f32 0.0, %v807
      %v809 = vpop.f32.mrf.mxu0
      %v810 = vadd.f32 0.0, %v809
      %811 = vmatmul.bf16.gmra.mxu0 %v700
      %v812 = vpop.f32.mrf.mxu0
      %v813 = vadd.f32 0.0, %v812
      %v814 = vpop.f32.mrf.mxu0
      %v815 = vadd.f32 0.0, %v814
      %816 = vmatmul.bf16.gmra.mxu0 %v703
      %v817 = vpop.f32.mrf.mxu0
      %v818 = vadd.f32 0.0, %v817
      %v819 = vpop.f32.mrf.mxu0
      %v820 = vadd.f32 0.0, %v819
      %821 = vmatmul.bf16.gmra.mxu0 %v706
      %v822 = vpop.f32.mrf.mxu0
      %v823 = vadd.f32 0.0, %v822
      %v824 = vpop.f32.mrf.mxu0
      %v825 = vadd.f32 0.0, %v824
      %826 = vmatmul.bf16.gmra.mxu0 %v709
      %v827 = vpop.f32.mrf.mxu0
      %v828 = vadd.f32 0.0, %v827
      %v829 = vpop.f32.mrf.mxu0
      %v830 = vadd.f32 0.0, %v829
      %831 = vmatmul.bf16.gmra.mxu0 %v712
      %v832 = vpop.f32.mrf.mxu0
      %v833 = vadd.f32 0.0, %v832
      %v834 = vpop.f32.mrf.mxu0
      %v835 = vadd.f32 0.0, %v834
      %836 = vmatmul.bf16.gmra.mxu0 %v715
      %v837 = vpop.f32.mrf.mxu0
      %v838 = vadd.f32 0.0, %v837
      %v839 = vpop.f32.mrf.mxu0
      %v840 = vadd.f32 0.0, %v839
      %841 = vmatmul.bf16.gmra.mxu0 %v718
      %v842 = vpop.f32.mrf.mxu0
      %v843 = vadd.f32 0.0, %v842
      %v844 = vpop.f32.mrf.mxu0
      %v845 = vadd.f32 0.0, %v844
      %846 = vmatmul.bf16.gmra.mxu0 %v721
      %v847 = vpop.f32.mrf.mxu0
      %v848 = vadd.f32 0.0, %v847
      %v849 = vpop.f32.mrf.mxu0
      %v850 = vadd.f32 0.0, %v849
      %851 = vmatmul.bf16.gmra.mxu0 %v724
      %v852 = vpop.f32.mrf.mxu0
      %v853 = vadd.f32 0.0, %v852
      %v854 = vpop.f32.mrf.mxu0
      %v855 = vadd.f32 0.0, %v854
      %856 = vmatmul.bf16.gmra.mxu0 %v727
      %v857 = vpop.f32.mrf.mxu0
      %v858 = vadd.f32 0.0, %v857
      %v859 = vpop.f32.mrf.mxu0
      %v860 = vadd.f32 0.0, %v859
      %861 = vmatmul.bf16.gmra.mxu0 %v730
      %v862 = vpop.f32.mrf.mxu0
      %v863 = vadd.f32 0.0, %v862
      %v864 = vpop.f32.mrf.mxu0
      %v865 = vadd.f32 0.0, %v864
      %866 = vmatmul.bf16.gmra.mxu0 %v733
      %v867 = vpop.f32.mrf.mxu0
      %v868 = vadd.f32 0.0, %v867
      %v869 = vpop.f32.mrf.mxu0
      %v870 = vadd.f32 0.0, %v869
      %871 = vmatmul.bf16.gmra.mxu0 %v736
      %v872 = vpop.f32.mrf.mxu0
      %v873 = vadd.f32 0.0, %v872
      %v874 = vpop.f32.mrf.mxu0
      %v875 = vadd.f32 0.0, %v874
      %876 = vmatmul.bf16.gmra.mxu0 %v739
      %v877 = vpop.f32.mrf.mxu0
      %v878 = vadd.f32 0.0, %v877
      %v879 = vpop.f32.mrf.mxu0
      %v880 = vadd.f32 0.0, %v879
      %881 = vmatmul.bf16.gmra.mxu0 %v742
      %v882 = vpop.f32.mrf.mxu0
      %v883 = vadd.f32 0.0, %v882
      %v884 = vpop.f32.mrf.mxu0
      %v885 = vadd.f32 0.0, %v884
      %886 = vmatmul.bf16.gmra.mxu0 %v745
      %v887 = vpop.f32.mrf.mxu0
      %v888 = vadd.f32 0.0, %v887
      %v889 = vpop.f32.mrf.mxu0
      %v890 = vadd.f32 0.0, %v889
      %891 = vmatmul.bf16.gmra.mxu0 %v748
      %v892 = vpop.f32.mrf.mxu0
      %v893 = vadd.f32 0.0, %v892
      %v894 = vpop.f32.mrf.mxu0
      %v895 = vadd.f32 0.0, %v894
      %896 = vmatmul.bf16.gmra.mxu0 %v751
      %v897 = vpop.f32.mrf.mxu0
      %v898 = vadd.f32 0.0, %v897
      %v899 = vpop.f32.mrf.mxu0
      %v900 = vadd.f32 0.0, %v899
      %901 = vmatmul.bf16.gmra.mxu0 %v754
      %v902 = vpop.f32.mrf.mxu0
      %v903 = vadd.f32 0.0, %v902
      %v904 = vpop.f32.mrf.mxu0
      %v905 = vadd.f32 0.0, %v904
      %906 = vmatmul.bf16.gmra.mxu0 %v757
      %v907 = vpop.f32.mrf.mxu0
      %v908 = vadd.f32 0.0, %v907
      %v909 = vpop.f32.mrf.mxu0
      %v910 = vadd.f32 0.0, %v909
      %911 = vmatmul.bf16.gmra.mxu0 %v760
      %v912 = vpop.f32.mrf.mxu0
      %v913 = vadd.f32 0.0, %v912
      %v914 = vpop.f32.mrf.mxu0
      %v915 = vadd.f32 0.0, %v914
      %916 = vmatmul.bf16.gmra.mxu0 %v763
      %v917 = vpop.f32.mrf.mxu0
      %v918 = vadd.f32 0.0, %v917
      %v919 = vpop.f32.mrf.mxu0
      %v920 = vadd.f32 0.0, %v919
      %921 = vmatmul.bf16.gmra.mxu0 %v766
      %v922 = vpop.f32.mrf.mxu0
      %v923 = vadd.f32 0.0, %v922
      %v924 = vpop.f32.mrf.mxu0
      %v925 = vadd.f32 0.0, %v924
      %926 = vmatmul.bf16.gmra.mxu0 %v769
      %v927 = vpop.f32.mrf.mxu0
      %v928 = vadd.f32 0.0, %v927
      %v929 = vpop.f32.mrf.mxu0
      %v930 = vadd.f32 0.0, %v929
      %931 = vmatmul.bf16.gmra.mxu0 %v772
      %v932 = vpop.f32.mrf.mxu0
      %v933 = vadd.f32 0.0, %v932
      %v934 = vpop.f32.mrf.mxu0
      %v935 = vadd.f32 0.0, %v934
      %936 = vmatmul.bf16.gmra.mxu0 %v775
      %v937 = vpop.f32.mrf.mxu0
      %v938 = vadd.f32 0.0, %v937
      %v939 = vpop.f32.mrf.mxu0
      %v940 = vadd.f32 0.0, %v939
      %941 = vmatmul.bf16.gmra.mxu0 %v778
      %v942 = vpop.f32.mrf.mxu0
      %v943 = vadd.f32 0.0, %v942
      %v944 = vpop.f32.mrf.mxu0
      %v945 = vadd.f32 0.0, %v944
      %946 = vmatmul.bf16.gmra.mxu0 %v781
      %v947 = vpop.f32.mrf.mxu0
      %v948 = vadd.f32 0.0, %v947
      %v949 = vpop.f32.mrf.mxu0
      %v950 = vadd.f32 0.0, %v949
      %951 = vmatmul.bf16.gmra.mxu0 %v784
      %v952 = vpop.f32.mrf.mxu0
      %v953 = vadd.f32 0.0, %v952
      %v954 = vpop.f32.mrf.mxu0
      %v955 = vadd.f32 0.0, %v954
      %956 = vmatmul.bf16.gmra.mxu0 %v787
      %v957 = vpop.f32.mrf.mxu0
      %v958 = vadd.f32 0.0, %v957
      %v959 = vpop.f32.mrf.mxu0
      %v960 = vadd.f32 0.0, %v959
      %961 = vmatmul.bf16.gmra.mxu0 %v790
      %v962 = vpop.f32.mrf.mxu0
      %v963 = vadd.f32 0.0, %v962
      %v964 = vpop.f32.mrf.mxu0
      %v965 = vadd.f32 0.0, %v964
      %966 = vdwg.mxu0
      %v967 = vadd.f32 %v443, %v808
      %v968 = vadd.f32 %v444, %v810
      %v969 = vadd.f32 %v445, %v813
      %v970 = vadd.f32 %v446, %v815
      %v971 = vadd.f32 %v447, %v818
      %v972 = vadd.f32 %v448, %v820
      %v973 = vadd.f32 %v449, %v823
      %v974 = vadd.f32 %v450, %v825
      %v975 = vadd.f32 %v451, %v828
      %v976 = vadd.f32 %v452, %v830
      %v977 = vadd.f32 %v453, %v833
      %v978 = vadd.f32 %v454, %v835
      %v979 = vadd.f32 %v455, %v838
      %v980 = vadd.f32 %v456, %v840
      %v981 = vadd.f32 %v457, %v843
      %v982 = vadd.f32 %v458, %v845
      %v983 = vadd.f32 %v459, %v848
      %v984 = vadd.f32 %v460, %v850
      %v985 = vadd.f32 %v461, %v853
      %v986 = vadd.f32 %v462, %v855
      %v987 = vadd.f32 %v463, %v858
      %v988 = vadd.f32 %v464, %v860
      %v989 = vadd.f32 %v465, %v863
      %v990 = vadd.f32 %v466, %v865
      %v991 = vadd.f32 %v467, %v868
      %v992 = vadd.f32 %v468, %v870
      %v993 = vadd.f32 %v469, %v873
      %v994 = vadd.f32 %v470, %v875
      %v995 = vadd.f32 %v471, %v878
      %v996 = vadd.f32 %v472, %v880
      %v997 = vadd.f32 %v473, %v883
      %v998 = vadd.f32 %v474, %v885
      %v999 = vadd.f32 %v475, %v888
      %v1000 = vadd.f32 %v476, %v890
      %v1001 = vadd.f32 %v477, %v893
      %v1002 = vadd.f32 %v478, %v895
      %v1003 = vadd.f32 %v479, %v898
      %v1004 = vadd.f32 %v480, %v900
      %v1005 = vadd.f32 %v481, %v903
      %v1006 = vadd.f32 %v482, %v905
      %v1007 = vadd.f32 %v483, %v908
      %v1008 = vadd.f32 %v484, %v910
      %v1009 = vadd.f32 %v485, %v913
      %v1010 = vadd.f32 %v486, %v915
      %v1011 = vadd.f32 %v487, %v918
      %v1012 = vadd.f32 %v488, %v920
      %v1013 = vadd.f32 %v489, %v923
      %v1014 = vadd.f32 %v490, %v925
      %v1015 = vadd.f32 %v491, %v928
      %v1016 = vadd.f32 %v492, %v930
      %v1017 = vadd.f32 %v493, %v933
      %v1018 = vadd.f32 %v494, %v935
      %v1019 = vadd.f32 %v495, %v938
      %v1020 = vadd.f32 %v496, %v940
      %v1021 = vadd.f32 %v497, %v943
      %v1022 = vadd.f32 %v498, %v945
      %v1023 = vadd.f32 %v499, %v948
      %v1024 = vadd.f32 %v500, %v950
      %v1025 = vadd.f32 %v501, %v953
      %v1026 = vadd.f32 %v502, %v955
      %v1027 = vadd.f32 %v503, %v958
      %v1028 = vadd.f32 %v504, %v960
      %v1029 = vadd.f32 %v505, %v963
      %v1030 = vadd.f32 %v506, %v965
      %vm1031 = vcmask 523264
      %1032 = vst.msk [vmem:[#allocation2] sm:$0xff] %vm1031, %v967
      %1033 = vst.msk [vmem:[#allocation2 + $0x8] sm:$0xff] %vm1031, %v968
      %1034 = vst.msk [vmem:[#allocation2 + $0x10] sm:$0xff] %vm1031, %v969
      %1035 = vst.msk [vmem:[#allocation2 + $0x18] sm:$0xff] %vm1031, %v970
      %1036 = vst.msk [vmem:[#allocation2 + $0x20] sm:$0xff] %vm1031, %v971
      %1037 = vst.msk [vmem:[#allocation2 + $0x28] sm:$0xff] %vm1031, %v972
      %1038 = vst.msk [vmem:[#allocation2 + $0x30] sm:$0xff] %vm1031, %v973
      %1039 = vst.msk [vmem:[#allocation2 + $0x38] sm:$0xff] %vm1031, %v974
      %1040 = vst.msk [vmem:[#allocation2 + $0x40] sm:$0xff] %vm1031, %v975
      %1041 = vst.msk [vmem:[#allocation2 + $0x48] sm:$0xff] %vm1031, %v976
      %1042 = vst.msk [vmem:[#allocation2 + $0x50] sm:$0xff] %vm1031, %v977
      %1043 = vst.msk [vmem:[#allocation2 + $0x58] sm:$0xff] %vm1031, %v978
      %1044 = vst.msk [vmem:[#allocation2 + $0x60] sm:$0xff] %vm1031, %v979
      %1045 = vst.msk [vmem:[#allocation2 + $0x68] sm:$0xff] %vm1031, %v980
      %1046 = vst.msk [vmem:[#allocation2 + $0x70] sm:$0xff] %vm1031, %v981
      %1047 = vst.msk [vmem:[#allocation2 + $0x78] sm:$0xff] %vm1031, %v982
      %1048 = vst.msk [vmem:[#allocation2 + $0x80] sm:$0xff] %vm1031, %v983
      %1049 = vst.msk [vmem:[#allocation2 + $0x88] sm:$0xff] %vm1031, %v984
      %1050 = vst.msk [vmem:[#allocation2 + $0x90] sm:$0xff] %vm1031, %v985
      %1051 = vst.msk [vmem:[#allocation2 + $0x98] sm:$0xff] %vm1031, %v986
      %1052 = vst.msk [vmem:[#allocation2 + $0xa0] sm:$0xff] %vm1031, %v987
      %1053 = vst.msk [vmem:[#allocation2 + $0xa8] sm:$0xff] %vm1031, %v988
      %1054 = vst.msk [vmem:[#allocation2 + $0xb0] sm:$0xff] %vm1031, %v989
      %1055 = vst.msk [vmem:[#allocation2 + $0xb8] sm:$0xff] %vm1031, %v990
      %1056 = vst.msk [vmem:[#allocation2 + $0xc0] sm:$0xff] %vm1031, %v991
      %1057 = vst.msk [vmem:[#allocation2 + $0xc8] sm:$0xff] %vm1031, %v992
      %1058 = vst.msk [vmem:[#allocation2 + $0xd0] sm:$0xff] %vm1031, %v993
      %1059 = vst.msk [vmem:[#allocation2 + $0xd8] sm:$0xff] %vm1031, %v994
      %1060 = vst.msk [vmem:[#allocation2 + $0xe0] sm:$0xff] %vm1031, %v995
      %1061 = vst.msk [vmem:[#allocation2 + $0xe8] sm:$0xff] %vm1031, %v996
      %1062 = vst.msk [vmem:[#allocation2 + $0xf0] sm:$0xff] %vm1031, %v997
      %1063 = vst.msk [vmem:[#allocation2 + $0xf8] sm:$0xff] %vm1031, %v998
      %1064 = vst.msk [vmem:[#allocation2 + $0x100] sm:$0xff] %vm1031, %v999
      %1065 = vst.msk [vmem:[#allocation2 + $0x108] sm:$0xff] %vm1031, %v1000
      %1066 = vst.msk [vmem:[#allocation2 + $0x110] sm:$0xff] %vm1031, %v1001
      %1067 = vst.msk [vmem:[#allocation2 + $0x118] sm:$0xff] %vm1031, %v1002
      %1068 = vst.msk [vmem:[#allocation2 + $0x120] sm:$0xff] %vm1031, %v1003
      %1069 = vst.msk [vmem:[#allocation2 + $0x128] sm:$0xff] %vm1031, %v1004
      %1070 = vst.msk [vmem:[#allocation2 + $0x130] sm:$0xff] %vm1031, %v1005
      %1071 = vst.msk [vmem:[#allocation2 + $0x138] sm:$0xff] %vm1031, %v1006
      %1072 = vst.msk [vmem:[#allocation2 + $0x140] sm:$0xff] %vm1031, %v1007
      %1073 = vst.msk [vmem:[#allocation2 + $0x148] sm:$0xff] %vm1031, %v1008
      %1074 = vst.msk [vmem:[#allocation2 + $0x150] sm:$0xff] %vm1031, %v1009
      %1075 = vst.msk [vmem:[#allocation2 + $0x158] sm:$0xff] %vm1031, %v1010
      %1076 = vst.msk [vmem:[#allocation2 + $0x160] sm:$0xff] %vm1031, %v1011
      %1077 = vst.msk [vmem:[#allocation2 + $0x168] sm:$0xff] %vm1031, %v1012
      %1078 = vst.msk [vmem:[#allocation2 + $0x170] sm:$0xff] %vm1031, %v1013
      %1079 = vst.msk [vmem:[#allocation2 + $0x178] sm:$0xff] %vm1031, %v1014
      %1080 = vst.msk [vmem:[#allocation2 + $0x180] sm:$0xff] %vm1031, %v1015
      %1081 = vst.msk [vmem:[#allocation2 + $0x188] sm:$0xff] %vm1031, %v1016
      %1082 = vst.msk [vmem:[#allocation2 + $0x190] sm:$0xff] %vm1031, %v1017
      %1083 = vst.msk [vmem:[#allocation2 + $0x198] sm:$0xff] %vm1031, %v1018
      %1084 = vst.msk [vmem:[#allocation2 + $0x1a0] sm:$0xff] %vm1031, %v1019
      %1085 = vst.msk [vmem:[#allocation2 + $0x1a8] sm:$0xff] %vm1031, %v1020
      %1086 = vst.msk [vmem:[#allocation2 + $0x1b0] sm:$0xff] %vm1031, %v1021
      %1087 = vst.msk [vmem:[#allocation2 + $0x1b8] sm:$0xff] %vm1031, %v1022
      %1088 = vst.msk [vmem:[#allocation2 + $0x1c0] sm:$0xff] %vm1031, %v1023
      %1089 = vst.msk [vmem:[#allocation2 + $0x1c8] sm:$0xff] %vm1031, %v1024
      %1090 = vst.msk [vmem:[#allocation2 + $0x1d0] sm:$0xff] %vm1031, %v1025
      %1091 = vst.msk [vmem:[#allocation2 + $0x1d8] sm:$0xff] %vm1031, %v1026
      %1092 = vst.msk [vmem:[#allocation2 + $0x1e0] sm:$0xff] %vm1031, %v1027
      %1093 = vst.msk [vmem:[#allocation2 + $0x1e8] sm:$0xff] %vm1031, %v1028
      %1094 = vst.msk [vmem:[#allocation2 + $0x1f0] sm:$0xff] %vm1031, %v1029
      %1095 = vst.msk [vmem:[#allocation2 + $0x1f8] sm:$0xff] %vm1031, %v1030
      // Predicated region
      $region33: #{tpu_custom_call.1} parent=27 // pred_check
        %p1096 = pneg %p310
      $region34: #{tpu_custom_call.1} parent=27 // pred_check_branch
        %1098 = sbr.rel (%p1096) target = $region36
      $region35: #{tpu_custom_call.1} parent=27 // pred_region
        %v1099 = vld [vmem:[#allocation2] sm:$0xff]
        %v1100 = vld [vmem:[#allocation2 + $0x8] sm:$0xff]
        %v1101 = vld [vmem:[#allocation2 + $0x10] sm:$0xff]
        %v1102 = vld [vmem:[#allocation2 + $0x18] sm:$0xff]
        %v1103 = vld [vmem:[#allocation2 + $0x20] sm:$0xff]
        %v1104 = vld [vmem:[#allocation2 + $0x28] sm:$0xff]
        %v1105 = vld [vmem:[#allocation2 + $0x30] sm:$0xff]
        %v1106 = vld [vmem:[#allocation2 + $0x38] sm:$0xff]
        %v1107 = vld [vmem:[#allocation2 + $0x40] sm:$0xff]
        %v1108 = vld [vmem:[#allocation2 + $0x48] sm:$0xff]
        %v1109 = vld [vmem:[#allocation2 + $0x50] sm:$0xff]
        %v1110 = vld [vmem:[#allocation2 + $0x58] sm:$0xff]
        %v1111 = vld [vmem:[#allocation2 + $0x60] sm:$0xff]
        %v1112 = vld [vmem:[#allocation2 + $0x68] sm:$0xff]
        %v1113 = vld [vmem:[#allocation2 + $0x70] sm:$0xff]
        %v1114 = vld [vmem:[#allocation2 + $0x78] sm:$0xff]
        %v1115 = vld [vmem:[#allocation2 + $0x80] sm:$0xff]
        %v1116 = vld [vmem:[#allocation2 + $0x88] sm:$0xff]
        %v1117 = vld [vmem:[#allocation2 + $0x90] sm:$0xff]
        %v1118 = vld [vmem:[#allocation2 + $0x98] sm:$0xff]
        %v1119 = vld [vmem:[#allocation2 + $0xa0] sm:$0xff]
        %v1120 = vld [vmem:[#allocation2 + $0xa8] sm:$0xff]
        %v1121 = vld [vmem:[#allocation2 + $0xb0] sm:$0xff]
        %v1122 = vld [vmem:[#allocation2 + $0xb8] sm:$0xff]
        %v1123 = vld [vmem:[#allocation2 + $0xc0] sm:$0xff]
        %v1124 = vld [vmem:[#allocation2 + $0xc8] sm:$0xff]
        %v1125 = vld [vmem:[#allocation2 + $0xd0] sm:$0xff]
        %v1126 = vld [vmem:[#allocation2 + $0xd8] sm:$0xff]
        %v1127 = vld [vmem:[#allocation2 + $0xe0] sm:$0xff]
        %v1128 = vld [vmem:[#allocation2 + $0xe8] sm:$0xff]
        %v1129 = vld [vmem:[#allocation2 + $0xf0] sm:$0xff]
        %v1130 = vld [vmem:[#allocation2 + $0xf8] sm:$0xff]
        %v1131 = vld [vmem:[#allocation2 + $0x100] sm:$0xff]
        %v1132 = vld [vmem:[#allocation2 + $0x108] sm:$0xff]
        %v1133 = vld [vmem:[#allocation2 + $0x110] sm:$0xff]
        %v1134 = vld [vmem:[#allocation2 + $0x118] sm:$0xff]
        %v1135 = vld [vmem:[#allocation2 + $0x120] sm:$0xff]
        %v1136 = vld [vmem:[#allocation2 + $0x128] sm:$0xff]
        %v1137 = vld [vmem:[#allocation2 + $0x130] sm:$0xff]
        %v1138 = vld [vmem:[#allocation2 + $0x138] sm:$0xff]
        %v1139 = vld [vmem:[#allocation2 + $0x140] sm:$0xff]
        %v1140 = vld [vmem:[#allocation2 + $0x148] sm:$0xff]
        %v1141 = vld [vmem:[#allocation2 + $0x150] sm:$0xff]
        %v1142 = vld [vmem:[#allocation2 + $0x158] sm:$0xff]
        %v1143 = vld [vmem:[#allocation2 + $0x160] sm:$0xff]
        %v1144 = vld [vmem:[#allocation2 + $0x168] sm:$0xff]
        %v1145 = vld [vmem:[#allocation2 + $0x170] sm:$0xff]
        %v1146 = vld [vmem:[#allocation2 + $0x178] sm:$0xff]
        %v1147 = vld [vmem:[#allocation2 + $0x180] sm:$0xff]
        %v1148 = vld [vmem:[#allocation2 + $0x188] sm:$0xff]
        %v1149 = vld [vmem:[#allocation2 + $0x190] sm:$0xff]
        %v1150 = vld [vmem:[#allocation2 + $0x198] sm:$0xff]
        %v1151 = vld [vmem:[#allocation2 + $0x1a0] sm:$0xff]
        %v1152 = vld [vmem:[#allocation2 + $0x1a8] sm:$0xff]
        %v1153 = vld [vmem:[#allocation2 + $0x1b0] sm:$0xff]
        %v1154 = vld [vmem:[#allocation2 + $0x1b8] sm:$0xff]
        %v1155 = vld [vmem:[#allocation2 + $0x1c0] sm:$0xff]
        %v1156 = vld [vmem:[#allocation2 + $0x1c8] sm:$0xff]
        %v1157 = vld [vmem:[#allocation2 + $0x1d0] sm:$0xff]
        %v1158 = vld [vmem:[#allocation2 + $0x1d8] sm:$0xff]
        %v1159 = vld [vmem:[#allocation2 + $0x1e0] sm:$0xff]
        %v1160 = vld [vmem:[#allocation2 + $0x1e8] sm:$0xff]
        %v1161 = vld [vmem:[#allocation2 + $0x1f0] sm:$0xff]
        %v1162 = vld [vmem:[#allocation2 + $0x1f8] sm:$0xff]
        %1163 = vst.msk [vmem:[%s293] sm:$0xff] %vm1031, %v1099
        %1164 = vst.msk [vmem:[%s293 + $0x8] sm:$0xff] %vm1031, %v1100
        %1165 = vst.msk [vmem:[%s293 + $0x10] sm:$0xff] %vm1031, %v1101
        %1166 = vst.msk [vmem:[%s293 + $0x18] sm:$0xff] %vm1031, %v1102
        %1167 = vst.msk [vmem:[%s293 + $0x20] sm:$0xff] %vm1031, %v1103
        %1168 = vst.msk [vmem:[%s293 + $0x28] sm:$0xff] %vm1031, %v1104
        %1169 = vst.msk [vmem:[%s293 + $0x30] sm:$0xff] %vm1031, %v1105
        %1170 = vst.msk [vmem:[%s293 + $0x38] sm:$0xff] %vm1031, %v1106
        %1171 = vst.msk [vmem:[%s293 + $0x40] sm:$0xff] %vm1031, %v1107
        %1172 = vst.msk [vmem:[%s293 + $0x48] sm:$0xff] %vm1031, %v1108
        %1173 = vst.msk [vmem:[%s293 + $0x50] sm:$0xff] %vm1031, %v1109
        %1174 = vst.msk [vmem:[%s293 + $0x58] sm:$0xff] %vm1031, %v1110
        %1175 = vst.msk [vmem:[%s293 + $0x60] sm:$0xff] %vm1031, %v1111
        %1176 = vst.msk [vmem:[%s293 + $0x68] sm:$0xff] %vm1031, %v1112
        %1177 = vst.msk [vmem:[%s293 + $0x70] sm:$0xff] %vm1031, %v1113
        %1178 = vst.msk [vmem:[%s293 + $0x78] sm:$0xff] %vm1031, %v1114
        %1179 = vst.msk [vmem:[%s293 + $0x80] sm:$0xff] %vm1031, %v1115
        %1180 = vst.msk [vmem:[%s293 + $0x88] sm:$0xff] %vm1031, %v1116
        %1181 = vst.msk [vmem:[%s293 + $0x90] sm:$0xff] %vm1031, %v1117
        %1182 = vst.msk [vmem:[%s293 + $0x98] sm:$0xff] %vm1031, %v1118
        %1183 = vst.msk [vmem:[%s293 + $0xa0] sm:$0xff] %vm1031, %v1119
        %1184 = vst.msk [vmem:[%s293 + $0xa8] sm:$0xff] %vm1031, %v1120
        %1185 = vst.msk [vmem:[%s293 + $0xb0] sm:$0xff] %vm1031, %v1121
        %1186 = vst.msk [vmem:[%s293 + $0xb8] sm:$0xff] %vm1031, %v1122
        %1187 = vst.msk [vmem:[%s293 + $0xc0] sm:$0xff] %vm1031, %v1123
        %1188 = vst.msk [vmem:[%s293 + $0xc8] sm:$0xff] %vm1031, %v1124
        %1189 = vst.msk [vmem:[%s293 + $0xd0] sm:$0xff] %vm1031, %v1125
        %1190 = vst.msk [vmem:[%s293 + $0xd8] sm:$0xff] %vm1031, %v1126
        %1191 = vst.msk [vmem:[%s293 + $0xe0] sm:$0xff] %vm1031, %v1127
        %1192 = vst.msk [vmem:[%s293 + $0xe8] sm:$0xff] %vm1031, %v1128
        %1193 = vst.msk [vmem:[%s293 + $0xf0] sm:$0xff] %vm1031, %v1129
        %1194 = vst.msk [vmem:[%s293 + $0xf8] sm:$0xff] %vm1031, %v1130
        %1195 = vst.msk [vmem:[%s293 + $0x100] sm:$0xff] %vm1031, %v1131
        %1196 = vst.msk [vmem:[%s293 + $0x108] sm:$0xff] %vm1031, %v1132
        %1197 = vst.msk [vmem:[%s293 + $0x110] sm:$0xff] %vm1031, %v1133
        %1198 = vst.msk [vmem:[%s293 + $0x118] sm:$0xff] %vm1031, %v1134
        %1199 = vst.msk [vmem:[%s293 + $0x120] sm:$0xff] %vm1031, %v1135
        %1200 = vst.msk [vmem:[%s293 + $0x128] sm:$0xff] %vm1031, %v1136
        %1201 = vst.msk [vmem:[%s293 + $0x130] sm:$0xff] %vm1031, %v1137
        %1202 = vst.msk [vmem:[%s293 + $0x138] sm:$0xff] %vm1031, %v1138
        %1203 = vst.msk [vmem:[%s293 + $0x140] sm:$0xff] %vm1031, %v1139
        %1204 = vst.msk [vmem:[%s293 + $0x148] sm:$0xff] %vm1031, %v1140
        %1205 = vst.msk [vmem:[%s293 + $0x150] sm:$0xff] %vm1031, %v1141
        %1206 = vst.msk [vmem:[%s293 + $0x158] sm:$0xff] %vm1031, %v1142
        %1207 = vst.msk [vmem:[%s293 + $0x160] sm:$0xff] %vm1031, %v1143
        %1208 = vst.msk [vmem:[%s293 + $0x168] sm:$0xff] %vm1031, %v1144
        %1209 = vst.msk [vmem:[%s293 + $0x170] sm:$0xff] %vm1031, %v1145
        %1210 = vst.msk [vmem:[%s293 + $0x178] sm:$0xff] %vm1031, %v1146
        %1211 = vst.msk [vmem:[%s293 + $0x180] sm:$0xff] %vm1031, %v1147
        %1212 = vst.msk [vmem:[%s293 + $0x188] sm:$0xff] %vm1031, %v1148
        %1213 = vst.msk [vmem:[%s293 + $0x190] sm:$0xff] %vm1031, %v1149
        %1214 = vst.msk [vmem:[%s293 + $0x198] sm:$0xff] %vm1031, %v1150
        %1215 = vst.msk [vmem:[%s293 + $0x1a0] sm:$0xff] %vm1031, %v1151
        %1216 = vst.msk [vmem:[%s293 + $0x1a8] sm:$0xff] %vm1031, %v1152
        %1217 = vst.msk [vmem:[%s293 + $0x1b0] sm:$0xff] %vm1031, %v1153
        %1218 = vst.msk [vmem:[%s293 + $0x1b8] sm:$0xff] %vm1031, %v1154
        %1219 = vst.msk [vmem:[%s293 + $0x1c0] sm:$0xff] %vm1031, %v1155
        %1220 = vst.msk [vmem:[%s293 + $0x1c8] sm:$0xff] %vm1031, %v1156
        %1221 = vst.msk [vmem:[%s293 + $0x1d0] sm:$0xff] %vm1031, %v1157
        %1222 = vst.msk [vmem:[%s293 + $0x1d8] sm:$0xff] %vm1031, %v1158
        %1223 = vst.msk [vmem:[%s293 + $0x1e0] sm:$0xff] %vm1031, %v1159
        %1224 = vst.msk [vmem:[%s293 + $0x1e8] sm:$0xff] %vm1031, %v1160
        %1225 = vst.msk [vmem:[%s293 + $0x1f0] sm:$0xff] %vm1031, %v1161
        %1226 = vst.msk [vmem:[%s293 + $0x1f8] sm:$0xff] %vm1031, %v1162
        %v1227 = vsel %vm1031, %v1099, 0.0
        %v1228 = vsel %vm1031, %v1100, 0.0
        %v1229 = vadd.f32 %v1227, %v1228
        %v1230 = vsel %vm1031, %v1101, 0.0
        %v1231 = vadd.f32 %v1229, %v1230
        %v1232 = vsel %vm1031, %v1102, 0.0
        %v1233 = vadd.f32 %v1231, %v1232
        %v1234 = vsel %vm1031, %v1103, 0.0
        %v1235 = vadd.f32 %v1233, %v1234
        %v1236 = vsel %vm1031, %v1104, 0.0
        %v1237 = vadd.f32 %v1235, %v1236
        %v1238 = vsel %vm1031, %v1105, 0.0
        %v1239 = vadd.f32 %v1237, %v1238
        %v1240 = vsel %vm1031, %v1106, 0.0
        %v1241 = vadd.f32 %v1239, %v1240
        %v1242 = vsel %vm1031, %v1107, 0.0
        %v1243 = vadd.f32 %v1241, %v1242
        %v1244 = vsel %vm1031, %v1108, 0.0
        %v1245 = vadd.f32 %v1243, %v1244
        %v1246 = vsel %vm1031, %v1109, 0.0
        %v1247 = vadd.f32 %v1245, %v1246
        %v1248 = vsel %vm1031, %v1110, 0.0
        %v1249 = vadd.f32 %v1247, %v1248
        %v1250 = vsel %vm1031, %v1111, 0.0
        %v1251 = vadd.f32 %v1249, %v1250
        %v1252 = vsel %vm1031, %v1112, 0.0
        %v1253 = vadd.f32 %v1251, %v1252
        %v1254 = vsel %vm1031, %v1113, 0.0
        %v1255 = vadd.f32 %v1253, %v1254
        %v1256 = vsel %vm1031, %v1114, 0.0
        %v1257 = vadd.f32 %v1255, %v1256
        %v1258 = vsel %vm1031, %v1115, 0.0
        %v1259 = vadd.f32 %v1257, %v1258
        %v1260 = vsel %vm1031, %v1116, 0.0
        %v1261 = vadd.f32 %v1259, %v1260
        %v1262 = vsel %vm1031, %v1117, 0.0
        %v1263 = vadd.f32 %v1261, %v1262
        %v1264 = vsel %vm1031, %v1118, 0.0
        %v1265 = vadd.f32 %v1263, %v1264
        %v1266 = vsel %vm1031, %v1119, 0.0
        %v1267 = vadd.f32 %v1265, %v1266
        %v1268 = vsel %vm1031, %v1120, 0.0
        %v1269 = vadd.f32 %v1267, %v1268
        %v1270 = vsel %vm1031, %v1121, 0.0
        %v1271 = vadd.f32 %v1269, %v1270
        %v1272 = vsel %vm1031, %v1122, 0.0
        %v1273 = vadd.f32 %v1271, %v1272
        %v1274 = vsel %vm1031, %v1123, 0.0
        %v1275 = vadd.f32 %v1273, %v1274
        %v1276 = vsel %vm1031, %v1124, 0.0
        %v1277 = vadd.f32 %v1275, %v1276
        %v1278 = vsel %vm1031, %v1125, 0.0
        %v1279 = vadd.f32 %v1277, %v1278
        %v1280 = vsel %vm1031, %v1126, 0.0
        %v1281 = vadd.f32 %v1279, %v1280
        %v1282 = vsel %vm1031, %v1127, 0.0
        %v1283 = vadd.f32 %v1281, %v1282
        %v1284 = vsel %vm1031, %v1128, 0.0
        %v1285 = vadd.f32 %v1283, %v1284
        %v1286 = vsel %vm1031, %v1129, 0.0
        %v1287 = vadd.f32 %v1285, %v1286
        %v1288 = vsel %vm1031, %v1130, 0.0
        %v1289 = vadd.f32 %v1287, %v1288
        %v1290 = vsel %vm1031, %v1131, 0.0
        %v1291 = vadd.f32 %v1289, %v1290
        %v1292 = vsel %vm1031, %v1132, 0.0
        %v1293 = vadd.f32 %v1291, %v1292
        %v1294 = vsel %vm1031, %v1133, 0.0
        %v1295 = vadd.f32 %v1293, %v1294
        %v1296 = vsel %vm1031, %v1134, 0.0
        %v1297 = vadd.f32 %v1295, %v1296
        %v1298 = vsel %vm1031, %v1135, 0.0
        %v1299 = vadd.f32 %v1297, %v1298
        %v1300 = vsel %vm1031, %v1136, 0.0
        %v1301 = vadd.f32 %v1299, %v1300
        %v1302 = vsel %vm1031, %v1137, 0.0
        %v1303 = vadd.f32 %v1301, %v1302
        %v1304 = vsel %vm1031, %v1138, 0.0
        %v1305 = vadd.f32 %v1303, %v1304
        %v1306 = vsel %vm1031, %v1139, 0.0
        %v1307 = vadd.f32 %v1305, %v1306
        %v1308 = vsel %vm1031, %v1140, 0.0
        %v1309 = vadd.f32 %v1307, %v1308
        %v1310 = vsel %vm1031, %v1141, 0.0
        %v1311 = vadd.f32 %v1309, %v1310
        %v1312 = vsel %vm1031, %v1142, 0.0
        %v1313 = vadd.f32 %v1311, %v1312
        %v1314 = vsel %vm1031, %v1143, 0.0
        %v1315 = vadd.f32 %v1313, %v1314
        %v1316 = vsel %vm1031, %v1144, 0.0
        %v1317 = vadd.f32 %v1315, %v1316
        %v1318 = vsel %vm1031, %v1145, 0.0
        %v1319 = vadd.f32 %v1317, %v1318
        %v1320 = vsel %vm1031, %v1146, 0.0
        %v1321 = vadd.f32 %v1319, %v1320
        %v1322 = vsel %vm1031, %v1147, 0.0
        %v1323 = vadd.f32 %v1321, %v1322
        %v1324 = vsel %vm1031, %v1148, 0.0
        %v1325 = vadd.f32 %v1323, %v1324
        %v1326 = vsel %vm1031, %v1149, 0.0
        %v1327 = vadd.f32 %v1325, %v1326
        %v1328 = vsel %vm1031, %v1150, 0.0
        %v1329 = vadd.f32 %v1327, %v1328
        %v1330 = vsel %vm1031, %v1151, 0.0
        %v1331 = vadd.f32 %v1329, %v1330
        %v1332 = vsel %vm1031, %v1152, 0.0
        %v1333 = vadd.f32 %v1331, %v1332
        %v1334 = vsel %vm1031, %v1153, 0.0
        %v1335 = vadd.f32 %v1333, %v1334
        %v1336 = vsel %vm1031, %v1154, 0.0
        %v1337 = vadd.f32 %v1335, %v1336
        %v1338 = vsel %vm1031, %v1155, 0.0
        %v1339 = vadd.f32 %v1337, %v1338
        %v1340 = vsel %vm1031, %v1156, 0.0
        %v1341 = vadd.f32 %v1339, %v1340
        %v1342 = vsel %vm1031, %v1157, 0.0
        %v1343 = vadd.f32 %v1341, %v1342
        %v1344 = vsel %vm1031, %v1158, 0.0
        %v1345 = vadd.f32 %v1343, %v1344
        %v1346 = vsel %vm1031, %v1159, 0.0
        %v1347 = vadd.f32 %v1345, %v1346
        %v1348 = vsel %vm1031, %v1160, 0.0
        %v1349 = vadd.f32 %v1347, %v1348
        %v1350 = vsel %vm1031, %v1161, 0.0
        %v1351 = vadd.f32 %v1349, %v1350
        %v1352 = vsel %vm1031, %v1162, 0.0
        %v1353 = vadd.f32 %v1351, %v1352
        %v1354 = vrot.slane %v1353, 4
        %v1355 = vadd.f32 %v1353, %v1354
        %v1356 = vrot.slane %v1355, 2
        %v1357 = vadd.f32 %v1355, %v1356
        %v1358 = vrot.slane %v1357, 1
        %v1359 = vadd.f32 %v1357, %v1358
        %v1360 = vmul.f32 %v1099, %v1099
        %v1361 = vmul.f32 %v1100, %v1100
        %v1362 = vmul.f32 %v1101, %v1101
        %v1363 = vmul.f32 %v1102, %v1102
        %v1364 = vmul.f32 %v1103, %v1103
        %v1365 = vmul.f32 %v1104, %v1104
        %v1366 = vmul.f32 %v1105, %v1105
        %v1367 = vmul.f32 %v1106, %v1106
        %v1368 = vmul.f32 %v1107, %v1107
        %v1369 = vmul.f32 %v1108, %v1108
        %v1370 = vmul.f32 %v1109, %v1109
        %v1371 = vmul.f32 %v1110, %v1110
        %v1372 = vmul.f32 %v1111, %v1111
        %v1373 = vmul.f32 %v1112, %v1112
        %v1374 = vmul.f32 %v1113, %v1113
        %v1375 = vmul.f32 %v1114, %v1114
        %v1376 = vmul.f32 %v1115, %v1115
        %v1377 = vmul.f32 %v1116, %v1116
        %v1378 = vmul.f32 %v1117, %v1117
        %v1379 = vmul.f32 %v1118, %v1118
        %v1380 = vmul.f32 %v1119, %v1119
        %v1381 = vmul.f32 %v1120, %v1120
        %v1382 = vmul.f32 %v1121, %v1121
        %v1383 = vmul.f32 %v1122, %v1122
        %v1384 = vmul.f32 %v1123, %v1123
        %v1385 = vmul.f32 %v1124, %v1124
        %v1386 = vmul.f32 %v1125, %v1125
        %v1387 = vmul.f32 %v1126, %v1126
        %v1388 = vmul.f32 %v1127, %v1127
        %v1389 = vmul.f32 %v1128, %v1128
        %v1390 = vmul.f32 %v1129, %v1129
        %v1391 = vmul.f32 %v1130, %v1130
        %v1392 = vmul.f32 %v1131, %v1131
        %v1393 = vmul.f32 %v1132, %v1132
        %v1394 = vmul.f32 %v1133, %v1133
        %v1395 = vmul.f32 %v1134, %v1134
        %v1396 = vmul.f32 %v1135, %v1135
        %v1397 = vmul.f32 %v1136, %v1136
        %v1398 = vmul.f32 %v1137, %v1137
        %v1399 = vmul.f32 %v1138, %v1138
        %v1400 = vmul.f32 %v1139, %v1139
        %v1401 = vmul.f32 %v1140, %v1140
        %v1402 = vmul.f32 %v1141, %v1141
        %v1403 = vmul.f32 %v1142, %v1142
        %v1404 = vmul.f32 %v1143, %v1143
        %v1405 = vmul.f32 %v1144, %v1144
        %v1406 = vmul.f32 %v1145, %v1145
        %v1407 = vmul.f32 %v1146, %v1146
        %v1408 = vmul.f32 %v1147, %v1147
        %v1409 = vmul.f32 %v1148, %v1148
        %v1410 = vmul.f32 %v1149, %v1149
        %v1411 = vmul.f32 %v1150, %v1150
        %v1412 = vmul.f32 %v1151, %v1151
        %v1413 = vmul.f32 %v1152, %v1152
        %v1414 = vmul.f32 %v1153, %v1153
        %v1415 = vmul.f32 %v1154, %v1154
        %v1416 = vmul.f32 %v1155, %v1155
        %v1417 = vmul.f32 %v1156, %v1156
        %v1418 = vmul.f32 %v1157, %v1157
        %v1419 = vmul.f32 %v1158, %v1158
        %v1420 = vmul.f32 %v1159, %v1159
        %v1421 = vmul.f32 %v1160, %v1160
        %v1422 = vmul.f32 %v1161, %v1161
        %v1423 = vmul.f32 %v1162, %v1162
        %v1424 = vsel %vm1031, %v1360, 0.0
        %v1425 = vsel %vm1031, %v1361, 0.0
        %v1426 = vadd.f32 %v1424, %v1425
        %v1427 = vsel %vm1031, %v1362, 0.0
        %v1428 = vadd.f32 %v1426, %v1427
        %v1429 = vsel %vm1031, %v1363, 0.0
        %v1430 = vadd.f32 %v1428, %v1429
        %v1431 = vsel %vm1031, %v1364, 0.0
        %v1432 = vadd.f32 %v1430, %v1431
        %v1433 = vsel %vm1031, %v1365, 0.0
        %v1434 = vadd.f32 %v1432, %v1433
        %v1435 = vsel %vm1031, %v1366, 0.0
        %v1436 = vadd.f32 %v1434, %v1435
        %v1437 = vsel %vm1031, %v1367, 0.0
        %v1438 = vadd.f32 %v1436, %v1437
        %v1439 = vsel %vm1031, %v1368, 0.0
        %v1440 = vadd.f32 %v1438, %v1439
        %v1441 = vsel %vm1031, %v1369, 0.0
        %v1442 = vadd.f32 %v1440, %v1441
        %v1443 = vsel %vm1031, %v1370, 0.0
        %v1444 = vadd.f32 %v1442, %v1443
        %v1445 = vsel %vm1031, %v1371, 0.0
        %v1446 = vadd.f32 %v1444, %v1445
        %v1447 = vsel %vm1031, %v1372, 0.0
        %v1448 = vadd.f32 %v1446, %v1447
        %v1449 = vsel %vm1031, %v1373, 0.0
        %v1450 = vadd.f32 %v1448, %v1449
        %v1451 = vsel %vm1031, %v1374, 0.0
        %v1452 = vadd.f32 %v1450, %v1451
        %v1453 = vsel %vm1031, %v1375, 0.0
        %v1454 = vadd.f32 %v1452, %v1453
        %v1455 = vsel %vm1031, %v1376, 0.0
        %v1456 = vadd.f32 %v1454, %v1455
        %v1457 = vsel %vm1031, %v1377, 0.0
        %v1458 = vadd.f32 %v1456, %v1457
        %v1459 = vsel %vm1031, %v1378, 0.0
        %v1460 = vadd.f32 %v1458, %v1459
        %v1461 = vsel %vm1031, %v1379, 0.0
        %v1462 = vadd.f32 %v1460, %v1461
        %v1463 = vsel %vm1031, %v1380, 0.0
        %v1464 = vadd.f32 %v1462, %v1463
        %v1465 = vsel %vm1031, %v1381, 0.0
        %v1466 = vadd.f32 %v1464, %v1465
        %v1467 = vsel %vm1031, %v1382, 0.0
        %v1468 = vadd.f32 %v1466, %v1467
        %v1469 = vsel %vm1031, %v1383, 0.0
        %v1470 = vadd.f32 %v1468, %v1469
        %v1471 = vsel %vm1031, %v1384, 0.0
        %v1472 = vadd.f32 %v1470, %v1471
        %v1473 = vsel %vm1031, %v1385, 0.0
        %v1474 = vadd.f32 %v1472, %v1473
        %v1475 = vsel %vm1031, %v1386, 0.0
        %v1476 = vadd.f32 %v1474, %v1475
        %v1477 = vsel %vm1031, %v1387, 0.0
        %v1478 = vadd.f32 %v1476, %v1477
        %v1479 = vsel %vm1031, %v1388, 0.0
        %v1480 = vadd.f32 %v1478, %v1479
        %v1481 = vsel %vm1031, %v1389, 0.0
        %v1482 = vadd.f32 %v1480, %v1481
        %v1483 = vsel %vm1031, %v1390, 0.0
        %v1484 = vadd.f32 %v1482, %v1483
        %v1485 = vsel %vm1031, %v1391, 0.0
        %v1486 = vadd.f32 %v1484, %v1485
        %v1487 = vsel %vm1031, %v1392, 0.0
        %v1488 = vadd.f32 %v1486, %v1487
        %v1489 = vsel %vm1031, %v1393, 0.0
        %v1490 = vadd.f32 %v1488, %v1489
        %v1491 = vsel %vm1031, %v1394, 0.0
        %v1492 = vadd.f32 %v1490, %v1491
        %v1493 = vsel %vm1031, %v1395, 0.0
        %v1494 = vadd.f32 %v1492, %v1493
        %v1495 = vsel %vm1031, %v1396, 0.0
        %v1496 = vadd.f32 %v1494, %v1495
        %v1497 = vsel %vm1031, %v1397, 0.0
        %v1498 = vadd.f32 %v1496, %v1497
        %v1499 = vsel %vm1031, %v1398, 0.0
        %v1500 = vadd.f32 %v1498, %v1499
        %v1501 = vsel %vm1031, %v1399, 0.0
        %v1502 = vadd.f32 %v1500, %v1501
        %v1503 = vsel %vm1031, %v1400, 0.0
        %v1504 = vadd.f32 %v1502, %v1503
        %v1505 = vsel %vm1031, %v1401, 0.0
        %v1506 = vadd.f32 %v1504, %v1505
        %v1507 = vsel %vm1031, %v1402, 0.0
        %v1508 = vadd.f32 %v1506, %v1507
        %v1509 = vsel %vm1031, %v1403, 0.0
        %v1510 = vadd.f32 %v1508, %v1509
        %v1511 = vsel %vm1031, %v1404, 0.0
        %v1512 = vadd.f32 %v1510, %v1511
        %v1513 = vsel %vm1031, %v1405, 0.0
        %v1514 = vadd.f32 %v1512, %v1513
        %v1515 = vsel %vm1031, %v1406, 0.0
        %v1516 = vadd.f32 %v1514, %v1515
        %v1517 = vsel %vm1031, %v1407, 0.0
        %v1518 = vadd.f32 %v1516, %v1517
        %v1519 = vsel %vm1031, %v1408, 0.0
        %v1520 = vadd.f32 %v1518, %v1519
        %v1521 = vsel %vm1031, %v1409, 0.0
        %v1522 = vadd.f32 %v1520, %v1521
        %v1523 = vsel %vm1031, %v1410, 0.0
        %v1524 = vadd.f32 %v1522, %v1523
        %v1525 = vsel %vm1031, %v1411, 0.0
        %v1526 = vadd.f32 %v1524, %v1525
        %v1527 = vsel %vm1031, %v1412, 0.0
        %v1528 = vadd.f32 %v1526, %v1527
        %v1529 = vsel %vm1031, %v1413, 0.0
        %v1530 = vadd.f32 %v1528, %v1529
        %v1531 = vsel %vm1031, %v1414, 0.0
        %v1532 = vadd.f32 %v1530, %v1531
        %v1533 = vsel %vm1031, %v1415, 0.0
        %v1534 = vadd.f32 %v1532, %v1533
        %v1535 = vsel %vm1031, %v1416, 0.0
        %v1536 = vadd.f32 %v1534, %v1535
        %v1537 = vsel %vm1031, %v1417, 0.0
        %v1538 = vadd.f32 %v1536, %v1537
        %v1539 = vsel %vm1031, %v1418, 0.0
        %v1540 = vadd.f32 %v1538, %v1539
        %v1541 = vsel %vm1031, %v1419, 0.0
        %v1542 = vadd.f32 %v1540, %v1541
        %v1543 = vsel %vm1031, %v1420, 0.0
        %v1544 = vadd.f32 %v1542, %v1543
        %v1545 = vsel %vm1031, %v1421, 0.0
        %v1546 = vadd.f32 %v1544, %v1545
        %v1547 = vsel %vm1031, %v1422, 0.0
        %v1548 = vadd.f32 %v1546, %v1547
        %v1549 = vsel %vm1031, %v1423, 0.0
        %v1550 = vadd.f32 %v1548, %v1549
        %v1551 = vrot.slane %v1550, 4
        %v1552 = vadd.f32 %v1550, %v1551
        %v1553 = vrot.slane %v1552, 2
        %v1554 = vadd.f32 %v1552, %v1553
        %v1555 = vrot.slane %v1554, 1
        %v1556 = vadd.f32 %v1554, %v1555
        %1557 = vst.msk [vmem:[%s301] sm:$0xff] %vm1031, %v1359
        %1558 = vst.msk [vmem:[%s308] sm:$0xff] %vm1031, %v1556
      $region36: #{tpu_custom_call.1} parent=27 // pred_fallthru
        _
      %s1559 = smul.u32 64, %s21
      %p1560 = scmp.lt.s32.totalorder %s1559, 3135
      %s1561 = scalar_select %p1560, %s1559, 3135
      %p1562 = scmp.lt.s32.totalorder %s22, 0
      %s1563 = scalar_select %p1562, %s22, 0
      %s1564 = sadd.s32 %s1563, %s1561
      %s1565 = smul.addr %s1564, 8
      %s1566 = scalar_lea.vmem %s2, %s1565
      %p1567 = scmp.lt.s32.totalorder %s21, 48
      %s1568 = scalar_select %p1567, %s21, 48
      %p1569 = scmp.lt.s32.totalorder %s22, 0
      %s1570 = scalar_select %p1569, %s22, 0
      %s1571 = sadd.s32 %s1570, %s1568
      %s1572 = smul.addr %s1571, 8
      %s1573 = scalar_lea.vmem %s3, %s1572
      %p1574 = scmp.lt.s32.totalorder %s21, 48
      %s1575 = scalar_select %p1574, %s21, 48
      %p1576 = scmp.lt.s32.totalorder %s22, 0
      %s1577 = scalar_select %p1576, %s22, 0
      %s1578 = sadd.s32 %s1577, %s1575
      %s1579 = smul.addr %s1578, 8
      %s1580 = scalar_lea.vmem %s4, %s1579
      // Predicated region
      $region37: #{tpu_custom_call.1} parent=27 // pred_check
        %p1581 = pneg %p111
      $region38: #{tpu_custom_call.1} parent=27 // pred_check_branch
        %1583 = sbr.rel (%p1581) target = $region40
      $region39: #{tpu_custom_call.1} parent=27 // pred_region
        %s1584 = smul.u32 64, %s21
      $region40: #{tpu_custom_call.1} parent=27 // pred_fallthru
        _
      // Predicated region
      $region41: #{tpu_custom_call.1} parent=27 // pred_check
        %p1585 = pneg %p139
      $region42: #{tpu_custom_call.1} parent=27 // pred_check_branch
        %1587 = sbr.rel (%p1585) target = $region44
      $region43: #{tpu_custom_call.1} parent=27 // pred_region
        _
      $region44: #{tpu_custom_call.1} parent=27 // pred_fallthru
        _
      // Predicated region
      $region45: #{tpu_custom_call.1} parent=27 // pred_check
        %p1588 = pneg %p167
      $region46: #{tpu_custom_call.1} parent=27 // pred_check_branch
        %1590 = sbr.rel (%p1588) target = $region48
      $region47: #{tpu_custom_call.1} parent=27 // pred_region
        _
      $region48: #{tpu_custom_call.1} parent=27 // pred_fallthru
        _
    $region28: #{tpu_custom_call.1} parent=5 // pred_fallthru
      _
    %p1591 = scmp.le.s32.totalorder 2, %s11
    // Predicated region
    $region49: #{tpu_custom_call.1} parent=5 // pred_check
      %p1592 = pneg %p1591
    $region50: #{tpu_custom_call.1} parent=5 // pred_check_branch
      %1594 = sbr.rel (%p1592) target = $region52
    $region51: #{tpu_custom_call.1} parent=5 // pred_region
      %s1595 = ssub.s32 %s11, 2
      // Predicated region
      $region53: #{tpu_custom_call.1} parent=51 // pred_check
        %p1596 = pneg %p117
      $region54: #{tpu_custom_call.1} parent=51 // pred_check_branch
        %1598 = sbr.rel (%p1596) target = $region56
      $region55: #{tpu_custom_call.1} parent=51 // pred_region
        %s1599 = smul.u32 64, %s24
        %p1600 = scmp.lt.s32.totalorder %s1599, 3135
        %s1601 = scalar_select %p1600, %s1599, 3135
        %p1602 = scmp.lt.s32.totalorder %s25, 0
        %s1603 = scalar_select %p1602, %s25, 0
        %s1604 = sadd.s32 %s1603, %s1601
        %s1605 = smul.addr %s1604, 8
        %s1606 = scalar_lea.vmem %s2, %s1605
      $region56: #{tpu_custom_call.1} parent=51 // pred_fallthru
        _
      // Predicated region
      $region57: #{tpu_custom_call.1} parent=51 // pred_check
        %p1607 = pneg %p145
      $region58: #{tpu_custom_call.1} parent=51 // pred_check_branch
        %1609 = sbr.rel (%p1607) target = $region60
      $region59: #{tpu_custom_call.1} parent=51 // pred_region
        %p1610 = scmp.lt.s32.totalorder %s24, 48
        %s1611 = scalar_select %p1610, %s24, 48
        %p1612 = scmp.lt.s32.totalorder %s25, 0
        %s1613 = scalar_select %p1612, %s25, 0
        %s1614 = sadd.s32 %s1613, %s1611
        %s1615 = smul.addr %s1614, 8
        %s1616 = scalar_lea.vmem %s3, %s1615
      $region60: #{tpu_custom_call.1} parent=51 // pred_fallthru
        _
      // Predicated region
      $region61: #{tpu_custom_call.1} parent=51 // pred_check
        %p1617 = pneg %p173
      $region62: #{tpu_custom_call.1} parent=51 // pred_check_branch
        %1619 = sbr.rel (%p1617) target = $region64
      $region63: #{tpu_custom_call.1} parent=51 // pred_region
        %p1620 = scmp.lt.s32.totalorder %s24, 48
        %s1621 = scalar_select %p1620, %s24, 48
        %p1622 = scmp.lt.s32.totalorder %s25, 0
        %s1623 = scalar_select %p1622, %s25, 0
        %s1624 = sadd.s32 %s1623, %s1621
        %s1625 = smul.addr %s1624, 8
        %s1626 = scalar_lea.vmem %s4, %s1625
      $region64: #{tpu_custom_call.1} parent=51 // pred_fallthru
        _
    $region52: #{tpu_custom_call.1} parent=5 // pred_fallthru
      _
  $region6: #{tpu_custom_call.1} parent=0 // loop_footer
    %s15 = sadd.s32 1, %s11
  $region7: #{tpu_custom_call.1} parent=0 // loop_footer_branch
    %10 = sbr.rel target = $region3
  $region8: #{tpu_custom_call.1} parent=0 // loop_exit
    _

</llo_original>
